<compile_context>
chip_gen: v6e
topology: v6e:2x2x1
jax: 0.10.0
libtpu: 0.0.40
codegen_flags: <defaults>
</compile_context>

<pallas_src>
import math
import functools

import jax
import jax.numpy as jnp
from jax.experimental import pallas as pl
from jax.experimental.pallas import tpu as pltpu


_VMEM_LIMIT = 64 * 1024 * 1024


def _tile(dim, preferred):
    """Largest tile <= preferred that exactly divides dim (full dim if small)."""
    if dim <= preferred:
        return dim
    t = preferred
    while t > 1 and dim % t != 0:
        t //= 2
    return t


def _cparams(dims):
    return pltpu.CompilerParams(dimension_semantics=dims,
                                vmem_limit_bytes=_VMEM_LIMIT)


def _layernorm_f32(x, g, b):
    # torch.nn.LayerNorm semantics: biased variance over last dim, eps=1e-5.
    mean = jnp.mean(x, axis=-1, keepdims=True)
    xc = x - mean
    var = jnp.mean(xc * xc, axis=-1, keepdims=True)
    return xc * jax.lax.rsqrt(var + 1e-5) * g + b


# -------------------- fused block-LN + QKV projection (3 outputs) -----------

def _ln_qkv_kernel(x_ref, g_ref, bln_ref,
                   wq_ref, bq_ref, wk_ref, bk_ref, wv_ref, bv_ref,
                   q_ref, k_ref, v_ref):
    xn = _layernorm_f32(x_ref[...], g_ref[...], bln_ref[...]).astype(jnp.bfloat16)
    q_ref[...] = jnp.dot(xn, wq_ref[...], preferred_element_type=jnp.float32) + bq_ref[...]
    k_ref[...] = jnp.dot(xn, wk_ref[...], preferred_element_type=jnp.float32) + bk_ref[...]
    v_ref[...] = jnp.dot(xn, wv_ref[...], preferred_element_type=jnp.float32) + bv_ref[...]


def ln_qkv(x2d, g, bln, wq, bq, wk, bk, wv, bv):
    M, K = x2d.shape
    N = wq.shape[1]
    tm, tn = _tile(M, 256), _tile(N, 256)
    x_spec = pl.BlockSpec((tm, K), lambda i, j: (i, 0))
    ln_spec = pl.BlockSpec((1, K), lambda i, j: (0, 0))
    w_spec = pl.BlockSpec((K, tn), lambda i, j: (0, j))
    b_spec = pl.BlockSpec((1, tn), lambda i, j: (0, j))
    o_spec = pl.BlockSpec((tm, tn), lambda i, j: (i, j))
    out_sd = jax.ShapeDtypeStruct((M, N), jnp.float32)
    return pl.pallas_call(
        _ln_qkv_kernel,
        out_shape=(out_sd, out_sd, out_sd),
        grid=(M // tm, N // tn),
        in_specs=[x_spec, ln_spec, ln_spec,
                  w_spec, b_spec, w_spec, b_spec, w_spec, b_spec],
        out_specs=(o_spec, o_spec, o_spec),
        compiler_params=_cparams(("parallel", "parallel")),
    )(x2d, g, bln, wq, bq, wk, bk, wv, bv)


# ------------ attention (+ W_o projection + MHA-LN + residual) ---------------
# One batch per grid step; all heads processed in-kernel so the output store
# is lane-dense (S, H*dh) and no (0,2,1,3) transposes are needed around it.
# The W_o matmul, MHA LayerNorm and the TransformerBlock residual are fused in,
# saving one pallas_call and one (B,S,D) f32 HBM round trip per layer.
# TODO(synk): at long S convert to a K/V-tiled online-softmax (flash) form.

def _attn_wo_ln_kernel(q_ref, k_ref, v_ref, pad_ref, x_ref,
                       wo_ref, bo_ref, g_ref, b_ref, out_ref,
                       *, n_heads, scale):
    S, D = q_ref.shape[1], q_ref.shape[2]
    dh = D // n_heads

    q16 = q_ref[0].astype(jnp.bfloat16)
    k16 = k_ref[0].astype(jnp.bfloat16)
    v16 = v_ref[0].astype(jnp.bfloat16)

    pad_row = pad_ref[0]  # (1, S) int32
    col = jax.lax.broadcasted_iota(jnp.int32, (S, S), 1)
    row = jax.lax.broadcasted_iota(jnp.int32, (S, S), 0)
    # True exactly where the torch reference's masked_fill writes -inf: the
    # reference fills at (pad-valid AND j <= i), i.e. the "allowed" positions;
    # reproduced faithfully.
    fill = (pad_row != 0) & (col <= row)

    outs = []
    for h in range(n_heads):
        lo = h * dh
        qh = q16[:, lo:lo + dh]
        kh = k16[:, lo:lo + dh]
        vh = v16[:, lo:lo + dh]
        s = jax.lax.dot_general(qh, kh, (((1,), (1,)), ((), ())),
                                preferred_element_type=jnp.float32) * scale
        s = jnp.where(fill, jnp.float32(-1e30), s)
        rowmax = jnp.max(s, axis=-1, keepdims=True)
        p = jnp.where(fill, 0.0, jnp.exp(s - rowmax))
        denom = jnp.sum(p, axis=-1, keepdims=True)
        # Fully masked rows -> NaN softmax -> nan_to_num(0) in torch; here -> 0.
        p = p / jnp.where(denom > 0.0, denom, 1.0)
        outs.append(jnp.dot(p.astype(jnp.bfloat16), vh,
                            preferred_element_type=jnp.float32))

    o_concat = jnp.concatenate(outs, axis=-1).astype(jnp.bfloat16)
    y = jnp.dot(o_concat, wo_ref[...],
                preferred_element_type=jnp.float32) + bo_ref[...]
    out_ref[0] = _layernorm_f32(y, g_ref[...], b_ref[...]) + x_ref[0]


def attn_wo_ln_residual(q, k, v, pad_b1s, x, wo, bo, g, b, *, n_heads, scale):
    B, S, D = q.shape
    bsd_spec = pl.BlockSpec((1, S, D), lambda bb: (bb, 0, 0))
    vec_spec = pl.BlockSpec((1, D), lambda bb: (0, 0))
    return pl.pallas_call(
        functools.partial(_attn_wo_ln_kernel, n_heads=n_heads, scale=scale),
        out_shape=jax.ShapeDtypeStruct((B, S, D), jnp.float32),
        grid=(B,),
        in_specs=[bsd_spec, bsd_spec, bsd_spec,
                  pl.BlockSpec((1, 1, S), lambda bb: (bb, 0, 0)),
                  bsd_spec,
                  pl.BlockSpec((D, D), lambda bb: (0, 0)),
                  vec_spec, vec_spec, vec_spec],
        out_specs=bsd_spec,
        compiler_params=_cparams(("parallel",)),
    )(q, k, v, pad_b1s, x, wo, bo, g, b)


# ------------- fused block-LN + FFN (d_ff-tiled) + residual add --------------

def _ffn_kernel(x_ref, g_ref, bln_ref, w1_ref, b1_ref, w2_ref, b2_ref, out_ref,
                xn_scr, acc_scr):
    kk = pl.program_id(1)

    @pl.when(kk == 0)
    def _():
        xn_scr[...] = _layernorm_f32(x_ref[...], g_ref[...],
                                     bln_ref[...]).astype(jnp.bfloat16)
        acc_scr[...] = jnp.zeros_like(acc_scr)

    # TODO(synk): FeedForward source not provided; assuming
    # Linear(d, 4d) -> GELU -> Linear(4d, d), dropout = identity (inference).
    h = jnp.dot(xn_scr[...], w1_ref[...],
                preferred_element_type=jnp.float32) + b1_ref[...]
    h = jax.nn.gelu(h)
    acc_scr[...] += jnp.dot(h.astype(jnp.bfloat16), w2_ref[...],
                            preferred_element_type=jnp.float32)

    @pl.when(kk == pl.num_programs(1) - 1)
    def _():
        out_ref[...] = acc_scr[...] + b2_ref[...] + x_ref[...]


def ffn_fused(r2d, g, bln, w1, b1, w2, b2):
    M, D = r2d.shape
    d_ff = w1.shape[1]
    tm, tf = _tile(M, 256), _tile(d_ff, 512)
    return pl.pallas_call(
        _ffn_kernel,
        out_shape=jax.ShapeDtypeStruct((M, D), jnp.float32),
        grid=(M // tm, d_ff // tf),
        in_specs=[pl.BlockSpec((tm, D), lambda i, k: (i, 0)),
                  pl.BlockSpec((1, D), lambda i, k: (0, 0)),
                  pl.BlockSpec((1, D), lambda i, k: (0, 0)),
                  pl.BlockSpec((D, tf), lambda i, k: (0, k)),
                  pl.BlockSpec((1, tf), lambda i, k: (0, k)),
                  pl.BlockSpec((tf, D), lambda i, k: (k, 0)),
                  pl.BlockSpec((1, D), lambda i, k: (0, 0))],
        out_specs=pl.BlockSpec((tm, D), lambda i, k: (i, 0)),
        scratch_shapes=[pltpu.VMEM((tm, D), jnp.bfloat16),
                        pltpu.VMEM((tm, D), jnp.float32)],
        compiler_params=_cparams(("parallel", "arbitrary")),
    )(r2d, g, bln, w1, b1, w2, b2)


# ----------------- fused final-LN + output head (vocab-tiled) ---------------

def _ln_matmul_kernel(x_ref, g_ref, bln_ref, w_ref, b_ref, o_ref):
    xn = _layernorm_f32(x_ref[...], g_ref[...], bln_ref[...]).astype(jnp.bfloat16)
    o_ref[...] = jnp.dot(xn, w_ref[...],
                         preferred_element_type=jnp.float32) + b_ref[...]


def ln_matmul(x2d, g, bln, w, b):
    M, K = x2d.shape
    N = w.shape[1]
    tm, tn = _tile(M, 256), _tile(N, 512)
    return pl.pallas_call(
        _ln_matmul_kernel,
        out_shape=jax.ShapeDtypeStruct((M, N), jnp.float32),
        grid=(M // tm, N // tn),
        in_specs=[pl.BlockSpec((tm, K), lambda i, j: (i, 0)),
                  pl.BlockSpec((1, K), lambda i, j: (0, 0)),
                  pl.BlockSpec((1, K), lambda i, j: (0, 0)),
                  pl.BlockSpec((K, tn), lambda i, j: (0, j)),
                  pl.BlockSpec((1, tn), lambda i, j: (0, j))],
        out_specs=pl.BlockSpec((tm, tn), lambda i, j: (i, j)),
        compiler_params=_cparams(("parallel", "parallel")),
    )(x2d, g, bln, w, b)


# ----------------------------- parameters -----------------------------------

def init_params(key, *, d_model, n_heads, n_layers, vocab_size, max_seq_len):
    dh = d_model // n_heads
    d_ff = 4 * d_model
    keys = jax.random.split(key, 4 + n_layers)

    def wbf16(k, shape, scale=0.02):
        return (scale * jax.random.normal(k, shape)).astype(jnp.bfloat16)

    def wf32(k, shape, scale=0.02):
        return (scale * jax.random.normal(k, shape)).astype(jnp.float32)

    params = {
        "embed": wf32(keys[0], (vocab_size, d_model)),
        "pos": wf32(keys[1], (max_seq_len, d_model)),
        "final_ln_g": jnp.ones((1, d_model), jnp.float32),
        "final_ln_b": jnp.zeros((1, d_model), jnp.float32),
        # TODO(synk): OutputHead source not provided; assuming Linear(d_model, vocab).
        "out_w": wbf16(keys[2], (d_model, vocab_size)),
        "out_b": jnp.zeros((1, vocab_size), jnp.float32),
        "layers": [],
    }
    for i in range(n_layers):
        lk = jax.random.split(keys[4 + i], 6)
        params["layers"].append({
            # per-head W_q/W_k/W_v concatenated along the output dim (head order)
            "wq": wbf16(lk[0], (d_model, n_heads * dh)),
            "bq": jnp.zeros((1, n_heads * dh), jnp.float32),
            "wk": wbf16(lk[1], (d_model, n_heads * dh)),
            "bk": jnp.zeros((1, n_heads * dh), jnp.float32),
            "wv": wbf16(lk[2], (d_model, n_heads * dh)),
            "bv": jnp.zeros((1, n_heads * dh), jnp.float32),
            "wo": wbf16(lk[3], (n_heads * dh, d_model)),
            "bo": jnp.zeros((1, d_model), jnp.float32),
            "mha_ln_g": jnp.ones((1, d_model), jnp.float32),
            "mha_ln_b": jnp.zeros((1, d_model), jnp.float32),
            "blk_ln_g": jnp.ones((1, d_model), jnp.float32),  # TransformerBlock.norm (shared)
            "blk_ln_b": jnp.zeros((1, d_model), jnp.float32),
            "w1": wbf16(lk[4], (d_model, 4 * d_model)),
            "b1": jnp.zeros((1, 4 * d_model), jnp.float32),
            "w2": wbf16(lk[5], (4 * d_model, d_model)),
            "b2": jnp.zeros((1, d_model), jnp.float32),
        })
    return params


# ----------------------------- forward pass ----------------------------------

def decoder_forward(params, input_ids, pad_mask, *, n_heads):
    B, S = input_ids.shape
    d_model = params["embed"].shape[1]
    dh = d_model // n_heads
    scale = 1.0 / math.sqrt(max(dh, 1))

    # token embedding + scaled positional embedding (matches the reference:
    # pos is scaled by sqrt(d_model)); dropout = identity (inference).
    x = params["embed"][input_ids] + params["pos"][:S] * math.sqrt(d_model)
    x = x.astype(jnp.float32)

    # Only the (B,S) pad row is passed; causal structure is rebuilt in-kernel
    # (no (B,S,S) mask tensor is ever materialized).
    pad_b1s = pad_mask.astype(jnp.int32).reshape(B, 1, S)

    for lp in params["layers"]:
        x2d = x.reshape(B * S, d_model)

        # --- block-LN + MultiHeadAttention (heads folded in the lane dim) ---
        q2d, k2d, v2d = ln_qkv(x2d, lp["blk_ln_g"], lp["blk_ln_b"],
                               lp["wq"], lp["bq"], lp["wk"], lp["bk"],
                               lp["wv"], lp["bv"])
        # attention + W_o + MHA-LN + residual fused in one call
        r = attn_wo_ln_residual(q2d.reshape(B, S, d_model),
                                k2d.reshape(B, S, d_model),
                                v2d.reshape(B, S, d_model),
                                pad_b1s, x,
                                lp["wo"], lp["bo"],
                                lp["mha_ln_g"], lp["mha_ln_b"],
                                n_heads=n_heads, scale=scale)

        # --- block-LN + FeedForward + residual ---
        x2d = ffn_fused(r.reshape(B * S, d_model),
                        lp["blk_ln_g"], lp["blk_ln_b"],
                        lp["w1"], lp["b1"], lp["w2"], lp["b2"])
        x = x2d.reshape(B, S, d_model)

    logits = ln_matmul(x.reshape(B * S, d_model),
                       params["final_ln_g"], params["final_ln_b"],
                       params["out_w"], params["out_b"])
    return logits.reshape(B, S, -1)


# --------------------------------- main ---------------------------------------

if __name__ == "__main__":
    B, S = 2, 8
    d_model, n_heads, n_layers = 32, 4, 2
    vocab_size, max_seq_len = 64, 16

    key = jax.random.PRNGKey(0)
    k_ids, k_params = jax.random.split(key)
    input_ids = jax.random.randint(k_ids, (B, S), 0, vocab_size, dtype=jnp.int32)
    pad_mask = jnp.ones((B, S), dtype=jnp.int32)   # explicit mask (all tokens valid)

    params = init_params(k_params, d_model=d_model, n_heads=n_heads,
                         n_layers=n_layers, vocab_size=vocab_size,
                         max_seq_len=max_seq_len)

    fwd = jax.jit(functools.partial(decoder_forward, n_heads=n_heads))
    out = fwd(params, input_ids, pad_mask)
    out = jax.block_until_ready(out)

    assert out.shape == (B, S, vocab_size)
    assert bool(jnp.all(jnp.isfinite(out)))
    print("KERNEL_OK")
</pallas_src>

<mosaic_0001>
module attributes {stable_mosaic.version = 11 : i64} {
  func.func @_ln_qkv_kernel(%arg0: i32, %arg1: i32, %arg2: memref<16x32xf32, #tpu.memory_space<vmem>>, %arg3: memref<1x32xf32, #tpu.memory_space<vmem>>, %arg4: memref<1x32xf32, #tpu.memory_space<vmem>>, %arg5: memref<32x32xbf16, #tpu.memory_space<vmem>>, %arg6: memref<1x32xf32, #tpu.memory_space<vmem>>, %arg7: memref<32x32xbf16, #tpu.memory_space<vmem>>, %arg8: memref<1x32xf32, #tpu.memory_space<vmem>>, %arg9: memref<32x32xbf16, #tpu.memory_space<vmem>>, %arg10: memref<1x32xf32, #tpu.memory_space<vmem>>, %arg11: memref<16x32xf32, #tpu.memory_space<vmem>>, %arg12: memref<16x32xf32, #tpu.memory_space<vmem>>, %arg13: memref<16x32xf32, #tpu.memory_space<vmem>>) attributes {dimension_semantics = [#tpu.dimension_semantics<parallel>, #tpu.dimension_semantics<parallel>], iteration_bounds = array<i64: 1, 1>, scalar_prefetch = 0 : i64, scratch_operands = 0 : i64, tpu.core_type = #tpu.core_type<tc>, window_params = [{transform_indices = @transform_0, window_bounds = array<i64: 16, 32>}, {pipeline_mode = #tpu.pipeline_mode<synchronous>, transform_indices = @transform_1, window_bounds = array<i64: 1, 32>}, {pipeline_mode = #tpu.pipeline_mode<synchronous>, transform_indices = @transform_2, window_bounds = array<i64: 1, 32>}, {transform_indices = @transform_3, window_bounds = array<i64: 32, 32>}, {transform_indices = @transform_4, window_bounds = array<i64: 1, 32>}, {transform_indices = @transform_5, window_bounds = array<i64: 32, 32>}, {transform_indices = @transform_6, window_bounds = array<i64: 1, 32>}, {transform_indices = @transform_7, window_bounds = array<i64: 32, 32>}, {transform_indices = @transform_8, window_bounds = array<i64: 1, 32>}, {transform_indices = @transform_9, window_bounds = array<i64: 16, 32>}, {transform_indices = @transform_10, window_bounds = array<i64: 16, 32>}, {transform_indices = @transform_11, window_bounds = array<i64: 16, 32>}]} {
    %c0 = arith.constant 0 : index
    %c0_0 = arith.constant 0 : index
    %0 = vector.load %arg2[%c0, %c0_0] : memref<16x32xf32, #tpu.memory_space<vmem>>, vector<16x32xf32>
    %c0_1 = arith.constant 0 : index
    %c0_2 = arith.constant 0 : index
    %1 = vector.load %arg3[%c0_1, %c0_2] : memref<1x32xf32, #tpu.memory_space<vmem>>, vector<1x32xf32>
    %c0_3 = arith.constant 0 : index
    %c0_4 = arith.constant 0 : index
    %2 = vector.load %arg4[%c0_3, %c0_4] : memref<1x32xf32, #tpu.memory_space<vmem>>, vector<1x32xf32>
    %cst = arith.constant dense<0.000000e+00> : vector<16xf32>
    %3 = vector.multi_reduction <add>, %0, %cst [1] : vector<16x32xf32> to vector<16xf32>
    %4 = vector.shape_cast %3 : vector<16xf32> to vector<16x1xf32>
    %cst_5 = arith.constant 3.200000e+01 : f32
    %5 = vector.broadcast %cst_5 : f32 to vector<16x1xf32>
    %6 = arith.divf %4, %5 : vector<16x1xf32>
    %7 = vector.broadcast %6 : vector<16x1xf32> to vector<16x32xf32>
    %8 = arith.subf %0, %7 : vector<16x32xf32>
    %9 = arith.mulf %8, %8 : vector<16x32xf32>
    %cst_6 = arith.constant dense<0.000000e+00> : vector<16xf32>
    %10 = vector.multi_reduction <add>, %9, %cst_6 [1] : vector<16x32xf32> to vector<16xf32>
    %11 = vector.shape_cast %10 : vector<16xf32> to vector<16x1xf32>
    %cst_7 = arith.constant 3.200000e+01 : f32
    %12 = vector.broadcast %cst_7 : f32 to vector<16x1xf32>
    %13 = arith.divf %11, %12 : vector<16x1xf32>
    %cst_8 = arith.constant 9.99999974E-6 : f32
    %14 = vector.broadcast %cst_8 : f32 to vector<16x1xf32>
    %15 = arith.addf %13, %14 : vector<16x1xf32>
    %16 = math.rsqrt %15 : vector<16x1xf32>
    %17 = vector.broadcast %16 : vector<16x1xf32> to vector<16x32xf32>
    %18 = arith.mulf %8, %17 : vector<16x32xf32>
    %19 = vector.broadcast %1 : vector<1x32xf32> to vector<16x32xf32>
    %20 = arith.mulf %18, %19 : vector<16x32xf32>
    %21 = vector.broadcast %2 : vector<1x32xf32> to vector<16x32xf32>
    %22 = arith.addf %20, %21 : vector<16x32xf32>
    %23 = arith.truncf %22 : vector<16x32xf32> to vector<16x32xbf16>
    %c0_9 = arith.constant 0 : index
    %c0_10 = arith.constant 0 : index
    %24 = vector.load %arg5[%c0_9, %c0_10] : memref<32x32xbf16, #tpu.memory_space<vmem>>, vector<32x32xbf16>
    %cst_11 = arith.constant dense<0.000000e+00> : vector<16x32xf32>
    %25 = tpu.matmul %23, %24, %cst_11 {dimension_numbers = #tpu.dot_dimension_numbers<[1], [0], [0], [1], [0, 0, 1, 1], [], []>} : vector<16x32xbf16>, vector<32x32xbf16>, vector<16x32xf32> -> vector<16x32xf32>
    %c0_12 = arith.constant 0 : index
    %c0_13 = arith.constant 0 : index
    %26 = vector.load %arg6[%c0_12, %c0_13] : memref<1x32xf32, #tpu.memory_space<vmem>>, vector<1x32xf32>
    %27 = vector.broadcast %26 : vector<1x32xf32> to vector<16x32xf32>
    %28 = arith.addf %25, %27 : vector<16x32xf32>
    %c0_14 = arith.constant 0 : index
    %c0_15 = arith.constant 0 : index
    %29 = vector.load %arg11[%c0_14, %c0_15] : memref<16x32xf32, #tpu.memory_space<vmem>>, vector<16x32xf32>
    tpu.vector_store %arg11[%c0_14, %c0_15], %28 {strides = array<i32>} : memref<16x32xf32, #tpu.memory_space<vmem>>, vector<16x32xf32>,
    %c0_16 = arith.constant 0 : index
    %c0_17 = arith.constant 0 : index
    %30 = vector.load %arg7[%c0_16, %c0_17] : memref<32x32xbf16, #tpu.memory_space<vmem>>, vector<32x32xbf16>
    %cst_18 = arith.constant dense<0.000000e+00> : vector<16x32xf32>
    %31 = tpu.matmul %23, %30, %cst_18 {dimension_numbers = #tpu.dot_dimension_numbers<[1], [0], [0], [1], [0, 0, 1, 1], [], []>} : vector<16x32xbf16>, vector<32x32xbf16>, vector<16x32xf32> -> vector<16x32xf32>
    %c0_19 = arith.constant 0 : index
    %c0_20 = arith.constant 0 : index
    %32 = vector.load %arg8[%c0_19, %c0_20] : memref<1x32xf32, #tpu.memory_space<vmem>>, vector<1x32xf32>
    %33 = vector.broadcast %32 : vector<1x32xf32> to vector<16x32xf32>
    %34 = arith.addf %31, %33 : vector<16x32xf32>
    %c0_21 = arith.constant 0 : index
    %c0_22 = arith.constant 0 : index
    %35 = vector.load %arg12[%c0_21, %c0_22] : memref<16x32xf32, #tpu.memory_space<vmem>>, vector<16x32xf32>
    tpu.vector_store %arg12[%c0_21, %c0_22], %34 {strides = array<i32>} : memref<16x32xf32, #tpu.memory_space<vmem>>, vector<16x32xf32>,
    %c0_23 = arith.constant 0 : index
    %c0_24 = arith.constant 0 : index
    %36 = vector.load %arg9[%c0_23, %c0_24] : memref<32x32xbf16, #tpu.memory_space<vmem>>, vector<32x32xbf16>
    %cst_25 = arith.constant dense<0.000000e+00> : vector<16x32xf32>
    %37 = tpu.matmul %23, %36, %cst_25 {dimension_numbers = #tpu.dot_dimension_numbers<[1], [0], [0], [1], [0, 0, 1, 1], [], []>} : vector<16x32xbf16>, vector<32x32xbf16>, vector<16x32xf32> -> vector<16x32xf32>
    %c0_26 = arith.constant 0 : index
    %c0_27 = arith.constant 0 : index
    %38 = vector.load %arg10[%c0_26, %c0_27] : memref<1x32xf32, #tpu.memory_space<vmem>>, vector<1x32xf32>
    %39 = vector.broadcast %38 : vector<1x32xf32> to vector<16x32xf32>
    %40 = arith.addf %37, %39 : vector<16x32xf32>
    %c0_28 = arith.constant 0 : index
    %c0_29 = arith.constant 0 : index
    %41 = vector.load %arg13[%c0_28, %c0_29] : memref<16x32xf32, #tpu.memory_space<vmem>>, vector<16x32xf32>
    tpu.vector_store %arg13[%c0_28, %c0_29], %40 {strides = array<i32>} : memref<16x32xf32, #tpu.memory_space<vmem>>, vector<16x32xf32>,
    return
  }
  func.func @transform_0(%arg0: i32, %arg1: i32) -> (i32, i32) {
    %c0_i32 = arith.constant 0 : i32
    %c0_i32_0 = arith.constant 0 : i32
    return %arg0, %c0_i32 : i32, i32
  }
  func.func @transform_1(%arg0: i32, %arg1: i32) -> (i32, i32) {
    %c0_i32 = arith.constant 0 : i32
    %c0_i32_0 = arith.constant 0 : i32
    %c0_i32_1 = arith.constant 0 : i32
    return %c0_i32, %c0_i32_0 : i32, i32
  }
  func.func @transform_2(%arg0: i32, %arg1: i32) -> (i32, i32) {
    %c0_i32 = arith.constant 0 : i32
    %c0_i32_0 = arith.constant 0 : i32
    %c0_i32_1 = arith.constant 0 : i32
    return %c0_i32, %c0_i32_0 : i32, i32
  }
  func.func @transform_3(%arg0: i32, %arg1: i32) -> (i32, i32) {
    %c0_i32 = arith.constant 0 : i32
    %c0_i32_0 = arith.constant 0 : i32
    return %c0_i32, %arg1 : i32, i32
  }
  func.func @transform_4(%arg0: i32, %arg1: i32) -> (i32, i32) {
    %c0_i32 = arith.constant 0 : i32
    %c0_i32_0 = arith.constant 0 : i32
    return %c0_i32, %arg1 : i32, i32
  }
  func.func @transform_5(%arg0: i32, %arg1: i32) -> (i32, i32) {
    %c0_i32 = arith.constant 0 : i32
    %c0_i32_0 = arith.constant 0 : i32
    return %c0_i32, %arg1 : i32, i32
  }
  func.func @transform_6(%arg0: i32, %arg1: i32) -> (i32, i32) {
    %c0_i32 = arith.constant 0 : i32
    %c0_i32_0 = arith.constant 0 : i32
    return %c0_i32, %arg1 : i32, i32
  }
  func.func @transform_7(%arg0: i32, %arg1: i32) -> (i32, i32) {
    %c0_i32 = arith.constant 0 : i32
    %c0_i32_0 = arith.constant 0 : i32
    return %c0_i32, %arg1 : i32, i32
  }
  func.func @transform_8(%arg0: i32, %arg1: i32) -> (i32, i32) {
    %c0_i32 = arith.constant 0 : i32
    %c0_i32_0 = arith.constant 0 : i32
    return %c0_i32, %arg1 : i32, i32
  }
  func.func @transform_9(%arg0: i32, %arg1: i32) -> (i32, i32) {
    %c0_i32 = arith.constant 0 : i32
    return %arg0, %arg1 : i32, i32
  }
  func.func @transform_10(%arg0: i32, %arg1: i32) -> (i32, i32) {
    %c0_i32 = arith.constant 0 : i32
    return %arg0, %arg1 : i32, i32
  }
  func.func @transform_11(%arg0: i32, %arg1: i32) -> (i32, i32) {
    %c0_i32 = arith.constant 0 : i32
    return %arg0, %arg1 : i32, i32
  }
}

module attributes {stable_mosaic.version = 11 : i64} {
  func.func @_ffn_kernel(%arg0: i32, %arg1: i32, %arg2: memref<16x32xf32, #tpu.memory_space<vmem>>, %arg3: memref<1x32xf32, #tpu.memory_space<vmem>>, %arg4: memref<1x32xf32, #tpu.memory_space<vmem>>, %arg5: memref<32x128xbf16, #tpu.memory_space<vmem>>, %arg6: memref<1x128xf32, #tpu.memory_space<vmem>>, %arg7: memref<128x32xbf16, #tpu.memory_space<vmem>>, %arg8: memref<1x32xf32, #tpu.memory_space<vmem>>, %arg9: memref<16x32xf32, #tpu.memory_space<vmem>>, %arg10: memref<16x32xbf16, #tpu.memory_space<vmem>>, %arg11: memref<16x32xf32, #tpu.memory_space<vmem>>) attributes {dimension_semantics = [#tpu.dimension_semantics<parallel>, #tpu.dimension_semantics<arbitrary>], iteration_bounds = array<i64: 1, 1>, scalar_prefetch = 0 : i64, scratch_operands = 2 : i64, tpu.core_type = #tpu.core_type<tc>, window_params = [{transform_indices = @transform_0, window_bounds = array<i64: 16, 32>}, {pipeline_mode = #tpu.pipeline_mode<synchronous>, transform_indices = @transform_1, window_bounds = array<i64: 1, 32>}, {pipeline_mode = #tpu.pipeline_mode<synchronous>, transform_indices = @transform_2, window_bounds = array<i64: 1, 32>}, {transform_indices = @transform_3, window_bounds = array<i64: 32, 128>}, {transform_indices = @transform_4, window_bounds = array<i64: 1, 128>}, {transform_indices = @transform_5, window_bounds = array<i64: 128, 32>}, {pipeline_mode = #tpu.pipeline_mode<synchronous>, transform_indices = @transform_6, window_bounds = array<i64: 1, 32>}, {transform_indices = @transform_7, window_bounds = array<i64: 16, 32>}]} {
    %c0_i32 = arith.constant 0 : i32
    %0 = arith.cmpi eq, %arg1, %c0_i32 : i32
    %1 = arith.extui %0 : i1 to i32
    %c0_i32_0 = arith.constant 0 : i32
    %2 = arith.cmpi ne, %1, %c0_i32_0 : i32
    scf.if %2 {
      %c0_19 = arith.constant 0 : index
      %c0_20 = arith.constant 0 : index
      %31 = vector.load %arg2[%c0_19, %c0_20] : memref<16x32xf32, #tpu.memory_space<vmem>>, vector<16x32xf32>
      %c0_21 = arith.constant 0 : index
      %c0_22 = arith.constant 0 : index
      %32 = vector.load %arg3[%c0_21, %c0_22] : memref<1x32xf32, #tpu.memory_space<vmem>>, vector<1x32xf32>
      %c0_23 = arith.constant 0 : index
      %c0_24 = arith.constant 0 : index
      %33 = vector.load %arg4[%c0_23, %c0_24] : memref<1x32xf32, #tpu.memory_space<vmem>>, vector<1x32xf32>
      %cst_25 = arith.constant dense<0.000000e+00> : vector<16xf32>
      %34 = vector.multi_reduction <add>, %31, %cst_25 [1] : vector<16x32xf32> to vector<16xf32>
      %35 = vector.shape_cast %34 : vector<16xf32> to vector<16x1xf32>
      %cst_26 = arith.constant 3.200000e+01 : f32
      %36 = vector.broadcast %cst_26 : f32 to vector<16x1xf32>
      %37 = arith.divf %35, %36 : vector<16x1xf32>
      %38 = vector.broadcast %37 : vector<16x1xf32> to vector<16x32xf32>
      %39 = arith.subf %31, %38 : vector<16x32xf32>
      %40 = arith.mulf %39, %39 : vector<16x32xf32>
      %cst_27 = arith.constant dense<0.000000e+00> : vector<16xf32>
      %41 = vector.multi_reduction <add>, %40, %cst_27 [1] : vector<16x32xf32> to vector<16xf32>
      %42 = vector.shape_cast %41 : vector<16xf32> to vector<16x1xf32>
      %cst_28 = arith.constant 3.200000e+01 : f32
      %43 = vector.broadcast %cst_28 : f32 to vector<16x1xf32>
      %44 = arith.divf %42, %43 : vector<16x1xf32>
      %cst_29 = arith.constant 9.99999974E-6 : f32
      %45 = vector.broadcast %cst_29 : f32 to vector<16x1xf32>
      %46 = arith.addf %44, %45 : vector<16x1xf32>
      %47 = math.rsqrt %46 : vector<16x1xf32>
      %48 = vector.broadcast %47 : vector<16x1xf32> to vector<16x32xf32>
      %49 = arith.mulf %39, %48 : vector<16x32xf32>
      %50 = vector.broadcast %32 : vector<1x32xf32> to vector<16x32xf32>
      %51 = arith.mulf %49, %50 : vector<16x32xf32>
      %52 = vector.broadcast %33 : vector<1x32xf32> to vector<16x32xf32>
      %53 = arith.addf %51, %52 : vector<16x32xf32>
      %54 = arith.truncf %53 : vector<16x32xf32> to vector<16x32xbf16>
      %c0_30 = arith.constant 0 : index
      %c0_31 = arith.constant 0 : index
      %55 = vector.load %arg10[%c0_30, %c0_31] : memref<16x32xbf16, #tpu.memory_space<vmem>>, vector<16x32xbf16>
      tpu.vector_store %arg10[%c0_30, %c0_31], %54 {strides = array<i32>} : memref<16x32xbf16, #tpu.memory_space<vmem>>, vector<16x32xbf16>,
      %cst_32 = arith.constant 0.000000e+00 : f32
      %56 = vector.broadcast %cst_32 : f32 to vector<16x32xf32>
      %c0_33 = arith.constant 0 : index
      %c0_34 = arith.constant 0 : index
      %57 = vector.load %arg11[%c0_33, %c0_34] : memref<16x32xf32, #tpu.memory_space<vmem>>, vector<16x32xf32>
      tpu.vector_store %arg11[%c0_33, %c0_34], %56 {strides = array<i32>} : memref<16x32xf32, #tpu.memory_space<vmem>>, vector<16x32xf32>,
    } else {
    }
    %c0 = arith.constant 0 : index
    %c0_1 = arith.constant 0 : index
    %3 = vector.load %arg10[%c0, %c0_1] : memref<16x32xbf16, #tpu.memory_space<vmem>>, vector<16x32xbf16>
    %c0_2 = arith.constant 0 : index
    %c0_3 = arith.constant 0 : index
    %4 = vector.load %arg5[%c0_2, %c0_3] : memref<32x128xbf16, #tpu.memory_space<vmem>>, vector<32x128xbf16>
    %cst = arith.constant dense<0.000000e+00> : vector<16x128xf32>
    %5 = tpu.matmul %3, %4, %cst {dimension_numbers = #tpu.dot_dimension_numbers<[1], [0], [0], [1], [0, 0, 1, 1], [], []>} : vector<16x32xbf16>, vector<32x128xbf16>, vector<16x128xf32> -> vector<16x128xf32>
    %c0_4 = arith.constant 0 : index
    %c0_5 = arith.constant 0 : index
    %6 = vector.load %arg6[%c0_4, %c0_5] : memref<1x128xf32, #tpu.memory_space<vmem>>, vector<1x128xf32>
    %7 = vector.broadcast %6 : vector<1x128xf32> to vector<16x128xf32>
    %8 = arith.addf %5, %7 : vector<16x128xf32>
    %9 = arith.mulf %8, %8 : vector<16x128xf32>
    %10 = arith.mulf %8, %9 : vector<16x128xf32>
    %cst_6 = arith.constant 4.471500e-02 : f32
    %11 = vector.broadcast %cst_6 : f32 to vector<16x128xf32>
    %12 = arith.mulf %11, %10 : vector<16x128xf32>
    %13 = arith.addf %8, %12 : vector<16x128xf32>
    %cst_7 = arith.constant 0.797884583 : f32
    %14 = vector.broadcast %cst_7 : f32 to vector<16x128xf32>
    %15 = arith.mulf %14, %13 : vector<16x128xf32>
    %16 = math.tanh %15 : vector<16x128xf32>
    %cst_8 = arith.constant 1.000000e+00 : f32
    %17 = vector.broadcast %cst_8 : f32 to vector<16x128xf32>
    %18 = arith.addf %17, %16 : vector<16x128xf32>
    %cst_9 = arith.constant 5.000000e-01 : f32
    %19 = vector.broadcast %cst_9 : f32 to vector<16x128xf32>
    %20 = arith.mulf %19, %18 : vector<16x128xf32>
    %21 = arith.mulf %8, %20 : vector<16x128xf32>
    %c0_10 = arith.constant 0 : index
    %c0_11 = arith.constant 0 : index
    %22 = vector.load %arg11[%c0_10, %c0_11] : memref<16x32xf32, #tpu.memory_space<vmem>>, vector<16x32xf32>
    %23 = arith.truncf %21 : vector<16x128xf32> to vector<16x128xbf16>
    %c0_12 = arith.constant 0 : index
    %c0_13 = arith.constant 0 : index
    %24 = vector.load %arg7[%c0_12, %c0_13] : memref<128x32xbf16, #tpu.memory_space<vmem>>, vector<128x32xbf16>
    %cst_14 = arith.constant dense<0.000000e+00> : vector<16x32xf32>
    %25 = tpu.matmul %23, %24, %cst_14 {dimension_numbers = #tpu.dot_dimension_numbers<[1], [0], [0], [1], [0, 0, 1, 1], [], []>} : vector<16x128xbf16>, vector<128x32xbf16>, vector<16x32xf32> -> vector<16x32xf32>
    %26 = arith.addf %22, %25 : vector<16x32xf32>
    %c0_15 = arith.constant 0 : index
    %c0_16 = arith.constant 0 : index
    %27 = vector.load %arg11[%c0_15, %c0_16] : memref<16x32xf32, #tpu.memory_space<vmem>>, vector<16x32xf32>
    tpu.vector_store %arg11[%c0_15, %c0_16], %26 {strides = array<i32>} : memref<16x32xf32, #tpu.memory_space<vmem>>, vector<16x32xf32>,
    %c0_i32_17 = arith.constant 0 : i32
    %28 = arith.cmpi eq, %arg1, %c0_i32_17 : i32
    %29 = arith.extui %28 : i1 to i32
    %c0_i32_18 = arith.constant 0 : i32
    %30 = arith.cmpi ne, %29, %c0_i32_18 : i32
    scf.if %30 {
      %c0_19 = arith.constant 0 : index
      %c0_20 = arith.constant 0 : index
      %31 = vector.load %arg11[%c0_19, %c0_20] : memref<16x32xf32, #tpu.memory_space<vmem>>, vector<16x32xf32>
      %c0_21 = arith.constant 0 : index
      %c0_22 = arith.constant 0 : index
      %32 = vector.load %arg8[%c0_21, %c0_22] : memref<1x32xf32, #tpu.memory_space<vmem>>, vector<1x32xf32>
      %33 = vector.broadcast %32 : vector<1x32xf32> to vector<16x32xf32>
      %34 = arith.addf %31, %33 : vector<16x32xf32>
      %c0_23 = arith.constant 0 : index
      %c0_24 = arith.constant 0 : index
      %35 = vector.load %arg2[%c0_23, %c0_24] : memref<16x32xf32, #tpu.memory_space<vmem>>, vector<16x32xf32>
      %36 = arith.addf %34, %35 : vector<16x32xf32>
      %c0_25 = arith.constant 0 : index
      %c0_26 = arith.constant 0 : index
      %37 = vector.load %arg9[%c0_25, %c0_26] : memref<16x32xf32, #tpu.memory_space<vmem>>, vector<16x32xf32>
      tpu.vector_store %arg9[%c0_25, %c0_26], %36 {strides = array<i32>} : memref<16x32xf32, #tpu.memory_space<vmem>>, vector<16x32xf32>,
    } else {
    }
    return
  }
  func.func @transform_0(%arg0: i32, %arg1: i32) -> (i32, i32) {
    %c0_i32 = arith.constant 0 : i32
    %c0_i32_0 = arith.constant 0 : i32
    return %arg0, %c0_i32 : i32, i32
  }
  func.func @transform_1(%arg0: i32, %arg1: i32) -> (i32, i32) {
    %c0_i32 = arith.constant 0 : i32
    %c0_i32_0 = arith.constant 0 : i32
    %c0_i32_1 = arith.constant 0 : i32
    return %c0_i32, %c0_i32_0 : i32, i32
  }
  func.func @transform_2(%arg0: i32, %arg1: i32) -> (i32, i32) {
    %c0_i32 = arith.constant 0 : i32
    %c0_i32_0 = arith.constant 0 : i32
    %c0_i32_1 = arith.constant 0 : i32
    return %c0_i32, %c0_i32_0 : i32, i32
  }
  func.func @transform_3(%arg0: i32, %arg1: i32) -> (i32, i32) {
    %c0_i32 = arith.constant 0 : i32
    %c0_i32_0 = arith.constant 0 : i32
    return %c0_i32, %arg1 : i32, i32
  }
  func.func @transform_4(%arg0: i32, %arg1: i32) -> (i32, i32) {
    %c0_i32 = arith.constant 0 : i32
    %c0_i32_0 = arith.constant 0 : i32
    return %c0_i32, %arg1 : i32, i32
  }
  func.func @transform_5(%arg0: i32, %arg1: i32) -> (i32, i32) {
    %c0_i32 = arith.constant 0 : i32
    %c0_i32_0 = arith.constant 0 : i32
    return %arg1, %c0_i32 : i32, i32
  }
  func.func @transform_6(%arg0: i32, %arg1: i32) -> (i32, i32) {
    %c0_i32 = arith.constant 0 : i32
    %c0_i32_0 = arith.constant 0 : i32
    %c0_i32_1 = arith.constant 0 : i32
    return %c0_i32, %c0_i32_0 : i32, i32
  }
  func.func @transform_7(%arg0: i32, %arg1: i32) -> (i32, i32) {
    %c0_i32 = arith.constant 0 : i32
    %c0_i32_0 = arith.constant 0 : i32
    return %arg0, %c0_i32 : i32, i32
  }
}

module attributes {stable_mosaic.version = 11 : i64} {
  func.func @_ln_matmul_kernel(%arg0: i32, %arg1: i32, %arg2: memref<16x32xf32, #tpu.memory_space<vmem>>, %arg3: memref<1x32xf32, #tpu.memory_space<vmem>>, %arg4: memref<1x32xf32, #tpu.memory_space<vmem>>, %arg5: memref<32x64xbf16, #tpu.memory_space<vmem>>, %arg6: memref<1x64xf32, #tpu.memory_space<vmem>>, %arg7: memref<16x64xf32, #tpu.memory_space<vmem>>) attributes {dimension_semantics = [#tpu.dimension_semantics<parallel>, #tpu.dimension_semantics<parallel>], iteration_bounds = array<i64: 1, 1>, scalar_prefetch = 0 : i64, scratch_operands = 0 : i64, tpu.core_type = #tpu.core_type<tc>, window_params = [{transform_indices = @transform_0, window_bounds = array<i64: 16, 32>}, {pipeline_mode = #tpu.pipeline_mode<synchronous>, transform_indices = @transform_1, window_bounds = array<i64: 1, 32>}, {pipeline_mode = #tpu.pipeline_mode<synchronous>, transform_indices = @transform_2, window_bounds = array<i64: 1, 32>}, {transform_indices = @transform_3, window_bounds = array<i64: 32, 64>}, {transform_indices = @transform_4, window_bounds = array<i64: 1, 64>}, {transform_indices = @transform_5, window_bounds = array<i64: 16, 64>}]} {
    %c0 = arith.constant 0 : index
    %c0_0 = arith.constant 0 : index
    %0 = vector.load %arg2[%c0, %c0_0] : memref<16x32xf32, #tpu.memory_space<vmem>>, vector<16x32xf32>
    %c0_1 = arith.constant 0 : index
    %c0_2 = arith.constant 0 : index
    %1 = vector.load %arg3[%c0_1, %c0_2] : memref<1x32xf32, #tpu.memory_space<vmem>>, vector<1x32xf32>
    %c0_3 = arith.constant 0 : index
    %c0_4 = arith.constant 0 : index
    %2 = vector.load %arg4[%c0_3, %c0_4] : memref<1x32xf32, #tpu.memory_space<vmem>>, vector<1x32xf32>
    %cst = arith.constant dense<0.000000e+00> : vector<16xf32>
    %3 = vector.multi_reduction <add>, %0, %cst [1] : vector<16x32xf32> to vector<16xf32>
    %4 = vector.shape_cast %3 : vector<16xf32> to vector<16x1xf32>
    %cst_5 = arith.constant 3.200000e+01 : f32
    %5 = vector.broadcast %cst_5 : f32 to vector<16x1xf32>
    %6 = arith.divf %4, %5 : vector<16x1xf32>
    %7 = vector.broadcast %6 : vector<16x1xf32> to vector<16x32xf32>
    %8 = arith.subf %0, %7 : vector<16x32xf32>
    %9 = arith.mulf %8, %8 : vector<16x32xf32>
    %cst_6 = arith.constant dense<0.000000e+00> : vector<16xf32>
    %10 = vector.multi_reduction <add>, %9, %cst_6 [1] : vector<16x32xf32> to vector<16xf32>
    %11 = vector.shape_cast %10 : vector<16xf32> to vector<16x1xf32>
    %cst_7 = arith.constant 3.200000e+01 : f32
    %12 = vector.broadcast %cst_7 : f32 to vector<16x1xf32>
    %13 = arith.divf %11, %12 : vector<16x1xf32>
    %cst_8 = arith.constant 9.99999974E-6 : f32
    %14 = vector.broadcast %cst_8 : f32 to vector<16x1xf32>
    %15 = arith.addf %13, %14 : vector<16x1xf32>
    %16 = math.rsqrt %15 : vector<16x1xf32>
    %17 = vector.broadcast %16 : vector<16x1xf32> to vector<16x32xf32>
    %18 = arith.mulf %8, %17 : vector<16x32xf32>
    %19 = vector.broadcast %1 : vector<1x32xf32> to vector<16x32xf32>
    %20 = arith.mulf %18, %19 : vector<16x32xf32>
    %21 = vector.broadcast %2 : vector<1x32xf32> to vector<16x32xf32>
    %22 = arith.addf %20, %21 : vector<16x32xf32>
    %23 = arith.truncf %22 : vector<16x32xf32> to vector<16x32xbf16>
    %c0_9 = arith.constant 0 : index
    %c0_10 = arith.constant 0 : index
    %24 = vector.load %arg5[%c0_9, %c0_10] : memref<32x64xbf16, #tpu.memory_space<vmem>>, vector<32x64xbf16>
    %cst_11 = arith.constant dense<0.000000e+00> : vector<16x64xf32>
    %25 = tpu.matmul %23, %24, %cst_11 {dimension_numbers = #tpu.dot_dimension_numbers<[1], [0], [0], [1], [0, 0, 1, 1], [], []>} : vector<16x32xbf16>, vector<32x64xbf16>, vector<16x64xf32> -> vector<16x64xf32>
    %c0_12 = arith.constant 0 : index
    %c0_13 = arith.constant 0 : index
    %26 = vector.load %arg6[%c0_12, %c0_13] : memref<1x64xf32, #tpu.memory_space<vmem>>, vector<1x64xf32>
    %27 = vector.broadcast %26 : vector<1x64xf32> to vector<16x64xf32>
    %28 = arith.addf %25, %27 : vector<16x64xf32>
    %c0_14 = arith.constant 0 : index
    %c0_15 = arith.constant 0 : index
    %29 = vector.load %arg7[%c0_14, %c0_15] : memref<16x64xf32, #tpu.memory_space<vmem>>, vector<16x64xf32>
    tpu.vector_store %arg7[%c0_14, %c0_15], %28 {strides = array<i32>} : memref<16x64xf32, #tpu.memory_space<vmem>>, vector<16x64xf32>,
    return
  }
  func.func @transform_0(%arg0: i32, %arg1: i32) -> (i32, i32) {
    %c0_i32 = arith.constant 0 : i32
    %c0_i32_0 = arith.constant 0 : i32
    return %arg0, %c0_i32 : i32, i32
  }
  func.func @transform_1(%arg0: i32, %arg1: i32) -> (i32, i32) {
    %c0_i32 = arith.constant 0 : i32
    %c0_i32_0 = arith.constant 0 : i32
    %c0_i32_1 = arith.constant 0 : i32
    return %c0_i32, %c0_i32_0 : i32, i32
  }
  func.func @transform_2(%arg0: i32, %arg1: i32) -> (i32, i32) {
    %c0_i32 = arith.constant 0 : i32
    %c0_i32_0 = arith.constant 0 : i32
    %c0_i32_1 = arith.constant 0 : i32
    return %c0_i32, %c0_i32_0 : i32, i32
  }
  func.func @transform_3(%arg0: i32, %arg1: i32) -> (i32, i32) {
    %c0_i32 = arith.constant 0 : i32
    %c0_i32_0 = arith.constant 0 : i32
    return %c0_i32, %arg1 : i32, i32
  }
  func.func @transform_4(%arg0: i32, %arg1: i32) -> (i32, i32) {
    %c0_i32 = arith.constant 0 : i32
    %c0_i32_0 = arith.constant 0 : i32
    return %c0_i32, %arg1 : i32, i32
  }
  func.func @transform_5(%arg0: i32, %arg1: i32) -> (i32, i32) {
    %c0_i32 = arith.constant 0 : i32
    return %arg0, %arg1 : i32, i32
  }
}

module attributes {stable_mosaic.version = 11 : i64} {
  func.func @_attn_wo_ln_kernel(%arg0: i32, %arg1: memref<1x8x32xf32, #tpu.memory_space<vmem>>, %arg2: memref<1x8x32xf32, #tpu.memory_space<vmem>>, %arg3: memref<1x8x32xf32, #tpu.memory_space<vmem>>, %arg4: memref<1x1x8xi32, #tpu.memory_space<vmem>>, %arg5: memref<1x8x32xf32, #tpu.memory_space<vmem>>, %arg6: memref<32x32xbf16, #tpu.memory_space<vmem>>, %arg7: memref<1x32xf32, #tpu.memory_space<vmem>>, %arg8: memref<1x32xf32, #tpu.memory_space<vmem>>, %arg9: memref<1x32xf32, #tpu.memory_space<vmem>>, %arg10: memref<1x8x32xf32, #tpu.memory_space<vmem>>) attributes {dimension_semantics = [#tpu.dimension_semantics<parallel>], iteration_bounds = array<i64: 2>, scalar_prefetch = 0 : i64, scratch_operands = 0 : i64, tpu.core_type = #tpu.core_type<tc>, window_params = [{transform_indices = @transform_0, window_bounds = array<i64: 1, 8, 32>}, {transform_indices = @transform_1, window_bounds = array<i64: 1, 8, 32>}, {transform_indices = @transform_2, window_bounds = array<i64: 1, 8, 32>}, {transform_indices = @transform_3, window_bounds = array<i64: 1, 1, 8>}, {transform_indices = @transform_4, window_bounds = array<i64: 1, 8, 32>}, {pipeline_mode = #tpu.pipeline_mode<synchronous>, transform_indices = @transform_5, window_bounds = array<i64: 32, 32>}, {pipeline_mode = #tpu.pipeline_mode<synchronous>, transform_indices = @transform_6, window_bounds = array<i64: 1, 32>}, {pipeline_mode = #tpu.pipeline_mode<synchronous>, transform_indices = @transform_7, window_bounds = array<i64: 1, 32>}, {pipeline_mode = #tpu.pipeline_mode<synchronous>, transform_indices = @transform_8, window_bounds = array<i64: 1, 32>}, {transform_indices = @transform_9, window_bounds = array<i64: 1, 8, 32>}]} {
    %c0 = arith.constant 0 : index
    %c0_0 = arith.constant 0 : index
    %c0_1 = arith.constant 0 : index
    %0 = vector.load %arg1[%c0, %c0_0, %c0_1] : memref<1x8x32xf32, #tpu.memory_space<vmem>>, vector<1x8x32xf32>
    %1 = vector.shape_cast %0 : vector<1x8x32xf32> to vector<8x32xf32>
    %2 = arith.truncf %1 : vector<8x32xf32> to vector<8x32xbf16>
    %c0_2 = arith.constant 0 : index
    %c0_3 = arith.constant 0 : index
    %c0_4 = arith.constant 0 : index
    %3 = vector.load %arg2[%c0_2, %c0_3, %c0_4] : memref<1x8x32xf32, #tpu.memory_space<vmem>>, vector<1x8x32xf32>
    %4 = vector.shape_cast %3 : vector<1x8x32xf32> to vector<8x32xf32>
    %5 = arith.truncf %4 : vector<8x32xf32> to vector<8x32xbf16>
    %c0_5 = arith.constant 0 : index
    %c0_6 = arith.constant 0 : index
    %c0_7 = arith.constant 0 : index
    %6 = vector.load %arg3[%c0_5, %c0_6, %c0_7] : memref<1x8x32xf32, #tpu.memory_space<vmem>>, vector<1x8x32xf32>
    %7 = vector.shape_cast %6 : vector<1x8x32xf32> to vector<8x32xf32>
    %8 = arith.truncf %7 : vector<8x32xf32> to vector<8x32xbf16>
    %c0_8 = arith.constant 0 : index
    %c0_9 = arith.constant 0 : index
    %c0_10 = arith.constant 0 : index
    %9 = vector.load %arg4[%c0_8, %c0_9, %c0_10] : memref<1x1x8xi32, #tpu.memory_space<vmem>>, vector<1x1x8xi32>
    %10 = vector.shape_cast %9 : vector<1x1x8xi32> to vector<1x8xi32>
    %11 = tpu.iota {dimensions = array<i32: 1>} : vector<8x8xi32>
    %12 = tpu.iota {dimensions = array<i32: 0>} : vector<8x8xi32>
    %c0_i32 = arith.constant 0 : i32
    %13 = vector.broadcast %c0_i32 : i32 to vector<1x8xi32>
    %14 = arith.cmpi ne, %10, %13 : vector<1x8xi32>
    %15 = arith.cmpi sle, %11, %12 : vector<8x8xi32>
    %16 = vector.broadcast %14 : vector<1x8xi1> to vector<8x8xi1>
    %17 = arith.andi %16, %15 : vector<8x8xi1>
    %18 = vector.extract_strided_slice %2 {offsets = [0, 0], sizes = [8, 8], strides = [1, 1]} : vector<8x32xbf16> to vector<8x8xbf16>
    %19 = vector.extract_strided_slice %5 {offsets = [0, 0], sizes = [8, 8], strides = [1, 1]} : vector<8x32xbf16> to vector<8x8xbf16>
    %20 = vector.extract_strided_slice %8 {offsets = [0, 0], sizes = [8, 8], strides = [1, 1]} : vector<8x32xbf16> to vector<8x8xbf16>
    %cst = arith.constant dense<0.000000e+00> : vector<8x8xf32>
    %21 = tpu.matmul %18, %19, %cst {dimension_numbers = #tpu.dot_dimension_numbers<[1], [1], [0], [0], [0, 0, 1, 0], [], []>} : vector<8x8xbf16>, vector<8x8xbf16>, vector<8x8xf32> -> vector<8x8xf32>
    %cst_11 = arith.constant 0.353553385 : f32
    %22 = vector.broadcast %cst_11 : f32 to vector<8x8xf32>
    %23 = arith.mulf %21, %22 : vector<8x8xf32>
    %cst_12 = arith.constant -1.000000e+30 : f32
    %24 = vector.broadcast %cst_12 : f32 to vector<8x8xf32>
    %25 = arith.select %17, %24, %23 : vector<8x8xi1>, vector<8x8xf32>
    %cst_13 = arith.constant dense<0xFF800000> : vector<8xf32>
    %26 = vector.multi_reduction <maximumf>, %25, %cst_13 [1] : vector<8x8xf32> to vector<8xf32>
    %27 = vector.shape_cast %26 : vector<8xf32> to vector<8x1xf32>
    %28 = vector.broadcast %27 : vector<8x1xf32> to vector<8x8xf32>
    %29 = arith.subf %25, %28 : vector<8x8xf32>
    %30 = math.exp %29 : vector<8x8xf32>
    %cst_14 = arith.constant 0.000000e+00 : f32
    %31 = vector.broadcast %cst_14 : f32 to vector<8x8xf32>
    %32 = arith.select %17, %31, %30 : vector<8x8xi1>, vector<8x8xf32>
    %cst_15 = arith.constant dense<0.000000e+00> : vector<8xf32>
    %33 = vector.multi_reduction <add>, %32, %cst_15 [1] : vector<8x8xf32> to vector<8xf32>
    %34 = vector.shape_cast %33 : vector<8xf32> to vector<8x1xf32>
    %cst_16 = arith.constant 0.000000e+00 : f32
    %35 = vector.broadcast %cst_16 : f32 to vector<8x1xf32>
    %36 = arith.cmpf ogt, %34, %35 : vector<8x1xf32>
    %cst_17 = arith.constant 1.000000e+00 : f32
    %37 = vector.broadcast %cst_17 : f32 to vector<8x1xf32>
    %38 = arith.select %36, %34, %37 : vector<8x1xi1>, vector<8x1xf32>
    %39 = vector.broadcast %38 : vector<8x1xf32> to vector<8x8xf32>
    %40 = arith.divf %32, %39 : vector<8x8xf32>
    %41 = arith.truncf %40 : vector<8x8xf32> to vector<8x8xbf16>
    %cst_18 = arith.constant dense<0.000000e+00> : vector<8x8xf32>
    %42 = tpu.matmul %41, %20, %cst_18 {dimension_numbers = #tpu.dot_dimension_numbers<[1], [0], [0], [1], [0, 0, 1, 1], [], []>} : vector<8x8xbf16>, vector<8x8xbf16>, vector<8x8xf32> -> vector<8x8xf32>
    %43 = vector.extract_strided_slice %2 {offsets = [0, 8], sizes = [8, 8], strides = [1, 1]} : vector<8x32xbf16> to vector<8x8xbf16>
    %44 = vector.extract_strided_slice %5 {offsets = [0, 8], sizes = [8, 8], strides = [1, 1]} : vector<8x32xbf16> to vector<8x8xbf16>
    %45 = vector.extract_strided_slice %8 {offsets = [0, 8], sizes = [8, 8], strides = [1, 1]} : vector<8x32xbf16> to vector<8x8xbf16>
    %cst_19 = arith.constant dense<0.000000e+00> : vector<8x8xf32>
    %46 = tpu.matmul %43, %44, %cst_19 {dimension_numbers = #tpu.dot_dimension_numbers<[1], [1], [0], [0], [0, 0, 1, 0], [], []>} : vector<8x8xbf16>, vector<8x8xbf16>, vector<8x8xf32> -> vector<8x8xf32>
    %cst_20 = arith.constant 0.353553385 : f32
    %47 = vector.broadcast %cst_20 : f32 to vector<8x8xf32>
    %48 = arith.mulf %46, %47 : vector<8x8xf32>
    %cst_21 = arith.constant -1.000000e+30 : f32
    %49 = vector.broadcast %cst_21 : f32 to vector<8x8xf32>
    %50 = arith.select %17, %49, %48 : vector<8x8xi1>, vector<8x8xf32>
    %cst_22 = arith.constant dense<0xFF800000> : vector<8xf32>
    %51 = vector.multi_reduction <maximumf>, %50, %cst_22 [1] : vector<8x8xf32> to vector<8xf32>
    %52 = vector.shape_cast %51 : vector<8xf32> to vector<8x1xf32>
    %53 = vector.broadcast %52 : vector<8x1xf32> to vector<8x8xf32>
    %54 = arith.subf %50, %53 : vector<8x8xf32>
    %55 = math.exp %54 : vector<8x8xf32>
    %cst_23 = arith.constant 0.000000e+00 : f32
    %56 = vector.broadcast %cst_23 : f32 to vector<8x8xf32>
    %57 = arith.select %17, %56, %55 : vector<8x8xi1>, vector<8x8xf32>
    %cst_24 = arith.constant dense<0.000000e+00> : vector<8xf32>
    %58 = vector.multi_reduction <add>, %57, %cst_24 [1] : vector<8x8xf32> to vector<8xf32>
    %59 = vector.shape_cast %58 : vector<8xf32> to vector<8x1xf32>
    %cst_25 = arith.constant 0.000000e+00 : f32
    %60 = vector.broadcast %cst_25 : f32 to vector<8x1xf32>
    %61 = arith.cmpf ogt, %59, %60 : vector<8x1xf32>
    %cst_26 = arith.constant 1.000000e+00 : f32
    %62 = vector.broadcast %cst_26 : f32 to vector<8x1xf32>
    %63 = arith.select %61, %59, %62 : vector<8x1xi1>, vector<8x1xf32>
    %64 = vector.broadcast %63 : vector<8x1xf32> to vector<8x8xf32>
    %65 = arith.divf %57, %64 : vector<8x8xf32>
    %66 = arith.truncf %65 : vector<8x8xf32> to vector<8x8xbf16>
    %cst_27 = arith.constant dense<0.000000e+00> : vector<8x8xf32>
    %67 = tpu.matmul %66, %45, %cst_27 {dimension_numbers = #tpu.dot_dimension_numbers<[1], [0], [0], [1], [0, 0, 1, 1], [], []>} : vector<8x8xbf16>, vector<8x8xbf16>, vector<8x8xf32> -> vector<8x8xf32>
    %68 = vector.extract_strided_slice %2 {offsets = [0, 16], sizes = [8, 8], strides = [1, 1]} : vector<8x32xbf16> to vector<8x8xbf16>
    %69 = vector.extract_strided_slice %5 {offsets = [0, 16], sizes = [8, 8], strides = [1, 1]} : vector<8x32xbf16> to vector<8x8xbf16>
    %70 = vector.extract_strided_slice %8 {offsets = [0, 16], sizes = [8, 8], strides = [1, 1]} : vector<8x32xbf16> to vector<8x8xbf16>
    %cst_28 = arith.constant dense<0.000000e+00> : vector<8x8xf32>
    %71 = tpu.matmul %68, %69, %cst_28 {dimension_numbers = #tpu.dot_dimension_numbers<[1], [1], [0], [0], [0, 0, 1, 0], [], []>} : vector<8x8xbf16>, vector<8x8xbf16>, vector<8x8xf32> -> vector<8x8xf32>
    %cst_29 = arith.constant 0.353553385 : f32
    %72 = vector.broadcast %cst_29 : f32 to vector<8x8xf32>
    %73 = arith.mulf %71, %72 : vector<8x8xf32>
    %cst_30 = arith.constant -1.000000e+30 : f32
    %74 = vector.broadcast %cst_30 : f32 to vector<8x8xf32>
    %75 = arith.select %17, %74, %73 : vector<8x8xi1>, vector<8x8xf32>
    %cst_31 = arith.constant dense<0xFF800000> : vector<8xf32>
    %76 = vector.multi_reduction <maximumf>, %75, %cst_31 [1] : vector<8x8xf32> to vector<8xf32>
    %77 = vector.shape_cast %76 : vector<8xf32> to vector<8x1xf32>
    %78 = vector.broadcast %77 : vector<8x1xf32> to vector<8x8xf32>
    %79 = arith.subf %75, %78 : vector<8x8xf32>
    %80 = math.exp %79 : vector<8x8xf32>
    %cst_32 = arith.constant 0.000000e+00 : f32
    %81 = vector.broadcast %cst_32 : f32 to vector<8x8xf32>
    %82 = arith.select %17, %81, %80 : vector<8x8xi1>, vector<8x8xf32>
    %cst_33 = arith.constant dense<0.000000e+00> : vector<8xf32>
    %83 = vector.multi_reduction <add>, %82, %cst_33 [1] : vector<8x8xf32> to vector<8xf32>
    %84 = vector.shape_cast %83 : vector<8xf32> to vector<8x1xf32>
    %cst_34 = arith.constant 0.000000e+00 : f32
    %85 = vector.broadcast %cst_34 : f32 to vector<8x1xf32>
    %86 = arith.cmpf ogt, %84, %85 : vector<8x1xf32>
    %cst_35 = arith.constant 1.000000e+00 : f32
    %87 = vector.broadcast %cst_35 : f32 to vector<8x1xf32>
    %88 = arith.select %86, %84, %87 : vector<8x1xi1>, vector<8x1xf32>
    %89 = vector.broadcast %88 : vector<8x1xf32> to vector<8x8xf32>
    %90 = arith.divf %82, %89 : vector<8x8xf32>
    %91 = arith.truncf %90 : vector<8x8xf32> to vector<8x8xbf16>
    %cst_36 = arith.constant dense<0.000000e+00> : vector<8x8xf32>
    %92 = tpu.matmul %91, %70, %cst_36 {dimension_numbers = #tpu.dot_dimension_numbers<[1], [0], [0], [1], [0, 0, 1, 1], [], []>} : vector<8x8xbf16>, vector<8x8xbf16>, vector<8x8xf32> -> vector<8x8xf32>
    %93 = vector.extract_strided_slice %2 {offsets = [0, 24], sizes = [8, 8], strides = [1, 1]} : vector<8x32xbf16> to vector<8x8xbf16>
    %94 = vector.extract_strided_slice %5 {offsets = [0, 24], sizes = [8, 8], strides = [1, 1]} : vector<8x32xbf16> to vector<8x8xbf16>
    %95 = vector.extract_strided_slice %8 {offsets = [0, 24], sizes = [8, 8], strides = [1, 1]} : vector<8x32xbf16> to vector<8x8xbf16>
    %cst_37 = arith.constant dense<0.000000e+00> : vector<8x8xf32>
    %96 = tpu.matmul %93, %94, %cst_37 {dimension_numbers = #tpu.dot_dimension_numbers<[1], [1], [0], [0], [0, 0, 1, 0], [], []>} : vector<8x8xbf16>, vector<8x8xbf16>, vector<8x8xf32> -> vector<8x8xf32>
    %cst_38 = arith.constant 0.353553385 : f32
    %97 = vector.broadcast %cst_38 : f32 to vector<8x8xf32>
    %98 = arith.mulf %96, %97 : vector<8x8xf32>
    %cst_39 = arith.constant -1.000000e+30 : f32
    %99 = vector.broadcast %cst_39 : f32 to vector<8x8xf32>
    %100 = arith.select %17, %99, %98 : vector<8x8xi1>, vector<8x8xf32>
    %cst_40 = arith.constant dense<0xFF800000> : vector<8xf32>
    %101 = vector.multi_reduction <maximumf>, %100, %cst_40 [1] : vector<8x8xf32> to vector<8xf32>
    %102 = vector.shape_cast %101 : vector<8xf32> to vector<8x1xf32>
    %103 = vector.broadcast %102 : vector<8x1xf32> to vector<8x8xf32>
    %104 = arith.subf %100, %103 : vector<8x8xf32>
    %105 = math.exp %104 : vector<8x8xf32>
    %cst_41 = arith.constant 0.000000e+00 : f32
    %106 = vector.broadcast %cst_41 : f32 to vector<8x8xf32>
    %107 = arith.select %17, %106, %105 : vector<8x8xi1>, vector<8x8xf32>
    %cst_42 = arith.constant dense<0.000000e+00> : vector<8xf32>
    %108 = vector.multi_reduction <add>, %107, %cst_42 [1] : vector<8x8xf32> to vector<8xf32>
    %109 = vector.shape_cast %108 : vector<8xf32> to vector<8x1xf32>
    %cst_43 = arith.constant 0.000000e+00 : f32
    %110 = vector.broadcast %cst_43 : f32 to vector<8x1xf32>
    %111 = arith.cmpf ogt, %109, %110 : vector<8x1xf32>
    %cst_44 = arith.constant 1.000000e+00 : f32
    %112 = vector.broadcast %cst_44 : f32 to vector<8x1xf32>
    %113 = arith.select %111, %109, %112 : vector<8x1xi1>, vector<8x1xf32>
    %114 = vector.broadcast %113 : vector<8x1xf32> to vector<8x8xf32>
    %115 = arith.divf %107, %114 : vector<8x8xf32>
    %116 = arith.truncf %115 : vector<8x8xf32> to vector<8x8xbf16>
    %cst_45 = arith.constant dense<0.000000e+00> : vector<8x8xf32>
    %117 = tpu.matmul %116, %95, %cst_45 {dimension_numbers = #tpu.dot_dimension_numbers<[1], [0], [0], [1], [0, 0, 1, 1], [], []>} : vector<8x8xbf16>, vector<8x8xbf16>, vector<8x8xf32> -> vector<8x8xf32>
    %118 = tpu.concatenate %42, %67, %92, %117 in 1 : vector<8x8xf32>, vector<8x8xf32>, vector<8x8xf32>, vector<8x8xf32> -> vector<8x32xf32>
    %119 = arith.truncf %118 : vector<8x32xf32> to vector<8x32xbf16>
    %c0_46 = arith.constant 0 : index
    %c0_47 = arith.constant 0 : index
    %120 = vector.load %arg6[%c0_46, %c0_47] : memref<32x32xbf16, #tpu.memory_space<vmem>>, vector<32x32xbf16>
    %cst_48 = arith.constant dense<0.000000e+00> : vector<8x32xf32>
    %121 = tpu.matmul %119, %120, %cst_48 {dimension_numbers = #tpu.dot_dimension_numbers<[1], [0], [0], [1], [0, 0, 1, 1], [], []>} : vector<8x32xbf16>, vector<32x32xbf16>, vector<8x32xf32> -> vector<8x32xf32>
    %c0_49 = arith.constant 0 : index
    %c0_50 = arith.constant 0 : index
    %122 = vector.load %arg7[%c0_49, %c0_50] : memref<1x32xf32, #tpu.memory_space<vmem>>, vector<1x32xf32>
    %123 = vector.broadcast %122 : vector<1x32xf32> to vector<8x32xf32>
    %124 = arith.addf %121, %123 : vector<8x32xf32>
    %c0_51 = arith.constant 0 : index
    %c0_52 = arith.constant 0 : index
    %125 = vector.load %arg8[%c0_51, %c0_52] : memref<1x32xf32, #tpu.memory_space<vmem>>, vector<1x32xf32>
    %c0_53 = arith.constant 0 : index
    %c0_54 = arith.constant 0 : index
    %126 = vector.load %arg9[%c0_53, %c0_54] : memref<1x32xf32, #tpu.memory_space<vmem>>, vector<1x32xf32>
    %cst_55 = arith.constant dense<0.000000e+00> : vector<8xf32>
    %127 = vector.multi_reduction <add>, %124, %cst_55 [1] : vector<8x32xf32> to vector<8xf32>
    %128 = vector.shape_cast %127 : vector<8xf32> to vector<8x1xf32>
    %cst_56 = arith.constant 3.200000e+01 : f32
    %129 = vector.broadcast %cst_56 : f32 to vector<8x1xf32>
    %130 = arith.divf %128, %129 : vector<8x1xf32>
    %131 = vector.broadcast %130 : vector<8x1xf32> to vector<8x32xf32>
    %132 = arith.subf %124, %131 : vector<8x32xf32>
    %133 = arith.mulf %132, %132 : vector<8x32xf32>
    %cst_57 = arith.constant dense<0.000000e+00> : vector<8xf32>
    %134 = vector.multi_reduction <add>, %133, %cst_57 [1] : vector<8x32xf32> to vector<8xf32>
    %135 = vector.shape_cast %134 : vector<8xf32> to vector<8x1xf32>
    %cst_58 = arith.constant 3.200000e+01 : f32
    %136 = vector.broadcast %cst_58 : f32 to vector<8x1xf32>
    %137 = arith.divf %135, %136 : vector<8x1xf32>
    %cst_59 = arith.constant 9.99999974E-6 : f32
    %138 = vector.broadcast %cst_59 : f32 to vector<8x1xf32>
    %139 = arith.addf %137, %138 : vector<8x1xf32>
    %140 = math.rsqrt %139 : vector<8x1xf32>
    %141 = vector.broadcast %140 : vector<8x1xf32> to vector<8x32xf32>
    %142 = arith.mulf %132, %141 : vector<8x32xf32>
    %143 = vector.broadcast %125 : vector<1x32xf32> to vector<8x32xf32>
    %144 = arith.mulf %142, %143 : vector<8x32xf32>
    %145 = vector.broadcast %126 : vector<1x32xf32> to vector<8x32xf32>
    %146 = arith.addf %144, %145 : vector<8x32xf32>
    %c0_60 = arith.constant 0 : index
    %c0_61 = arith.constant 0 : index
    %c0_62 = arith.constant 0 : index
    %147 = vector.load %arg5[%c0_60, %c0_61, %c0_62] : memref<1x8x32xf32, #tpu.memory_space<vmem>>, vector<1x8x32xf32>
    %148 = vector.shape_cast %147 : vector<1x8x32xf32> to vector<8x32xf32>
    %149 = arith.addf %146, %148 : vector<8x32xf32>
    %c0_63 = arith.constant 0 : index
    %c0_64 = arith.constant 0 : index
    %c0_65 = arith.constant 0 : index
    %150 = vector.load %arg10[%c0_63, %c0_64, %c0_65] : memref<1x8x32xf32, #tpu.memory_space<vmem>>, vector<1x8x32xf32>
    %151 = vector.shape_cast %150 : vector<1x8x32xf32> to vector<8x32xf32>
    %152 = vector.shape_cast %149 : vector<8x32xf32> to vector<1x8x32xf32>
    tpu.vector_store %arg10[%c0_63, %c0_64, %c0_65], %152 {strides = array<i32>} : memref<1x8x32xf32, #tpu.memory_space<vmem>>, vector<1x8x32xf32>,
    return
  }
  func.func @transform_0(%arg0: i32) -> (i32, i32, i32) {
    %c0_i32 = arith.constant 0 : i32
    %c0_i32_0 = arith.constant 0 : i32
    %c0_i32_1 = arith.constant 0 : i32
    return %arg0, %c0_i32, %c0_i32_0 : i32, i32, i32
  }
  func.func @transform_1(%arg0: i32) -> (i32, i32, i32) {
    %c0_i32 = arith.constant 0 : i32
    %c0_i32_0 = arith.constant 0 : i32
    %c0_i32_1 = arith.constant 0 : i32
    return %arg0, %c0_i32, %c0_i32_0 : i32, i32, i32
  }
  func.func @transform_2(%arg0: i32) -> (i32, i32, i32) {
    %c0_i32 = arith.constant 0 : i32
    %c0_i32_0 = arith.constant 0 : i32
    %c0_i32_1 = arith.constant 0 : i32
    return %arg0, %c0_i32, %c0_i32_0 : i32, i32, i32
  }
  func.func @transform_3(%arg0: i32) -> (i32, i32, i32) {
    %c0_i32 = arith.constant 0 : i32
    %c0_i32_0 = arith.constant 0 : i32
    %c0_i32_1 = arith.constant 0 : i32
    return %arg0, %c0_i32, %c0_i32_0 : i32, i32, i32
  }
  func.func @transform_4(%arg0: i32) -> (i32, i32, i32) {
    %c0_i32 = arith.constant 0 : i32
    %c0_i32_0 = arith.constant 0 : i32
    %c0_i32_1 = arith.constant 0 : i32
    return %arg0, %c0_i32, %c0_i32_0 : i32, i32, i32
  }
  func.func @transform_5(%arg0: i32) -> (i32, i32) {
    %c0_i32 = arith.constant 0 : i32
    %c0_i32_0 = arith.constant 0 : i32
    %c0_i32_1 = arith.constant 0 : i32
    return %c0_i32, %c0_i32_0 : i32, i32
  }
  func.func @transform_6(%arg0: i32) -> (i32, i32) {
    %c0_i32 = arith.constant 0 : i32
    %c0_i32_0 = arith.constant 0 : i32
    %c0_i32_1 = arith.constant 0 : i32
    return %c0_i32, %c0_i32_0 : i32, i32
  }
  func.func @transform_7(%arg0: i32) -> (i32, i32) {
    %c0_i32 = arith.constant 0 : i32
    %c0_i32_0 = arith.constant 0 : i32
    %c0_i32_1 = arith.constant 0 : i32
    return %c0_i32, %c0_i32_0 : i32, i32
  }
  func.func @transform_8(%arg0: i32) -> (i32, i32) {
    %c0_i32 = arith.constant 0 : i32
    %c0_i32_0 = arith.constant 0 : i32
    %c0_i32_1 = arith.constant 0 : i32
    return %c0_i32, %c0_i32_0 : i32, i32
  }
  func.func @transform_9(%arg0: i32) -> (i32, i32, i32) {
    %c0_i32 = arith.constant 0 : i32
    %c0_i32_0 = arith.constant 0 : i32
    %c0_i32_1 = arith.constant 0 : i32
    return %arg0, %c0_i32, %c0_i32_0 : i32, i32, i32
  }
}

</mosaic_0001>

<llo_original>
// kernel: decoder_forward.13
$region0: #{decoder_forward.13}
  #allocation0 [shape = 'u32[]', space=smem, size = 0x4, offset = 0x4, fixed_abs, tag = 'smem constant byte address 0x4 - core index']
  #allocation1 [shape = 'u32[144,128]{1,0:T(1,128)}', space=vmem, size = 0x12000, scoped, tag = 'internal scratch']
  %s0 = inlined_call_operand.vmem [shape: f32[16,32], index: 0, kind: input, shape index: {}]
  %s1 = inlined_call_operand.vmem [shape: f32[1,32], index: 1, kind: input, shape index: {}]
  %s2 = inlined_call_operand.vmem [shape: f32[1,32], index: 2, kind: input, shape index: {}]
  %s3 = inlined_call_operand.vmem [shape: bf16[32,64], index: 3, kind: input, shape index: {}]
  %s4 = inlined_call_operand.vmem [shape: f32[1,64], index: 4, kind: input, shape index: {}]
  %s5 = inlined_call_operand.hbm [shape: f32[16,64], index: 5, kind: output, shape index: {}]
  %s6 = sld [smem:[#allocation0]]
  $region30: #{decoder_forward.13} parent=0
    _
  %s8 = ssub.s32 1, %s6
  %s9 = scalar_select 0, %s8, %s6
  $region1: #{decoder_forward.13} parent=0
    #allocation2 [shape = 'u8[8192]{0}', space=vmem, size = 0x2000, scoped, tag = 'output window, operand 0, single buffered']
    #allocation3 [shape = 's32[1]{0}', space=sflag, size = 0x4, scoped, tag = 'scoped memory for decoder_forward.13']
    %10 = vsyncpa [#allocation3], 0
    // Predicated region
    $region2: #{decoder_forward.13} parent=1 // pred_check
      _
    $region3: #{decoder_forward.13} parent=1 // pred_check_branch
      %12 = sbr.rel (0) target = $region5
    $region4: #{decoder_forward.13} parent=1 // pred_region
      _
    $region5: #{decoder_forward.13} parent=1 // pred_fallthru
      _
    // Predicated region
    $region6: #{decoder_forward.13} parent=1 // pred_check
      _
    $region7: #{decoder_forward.13} parent=1 // pred_check_branch
      %14 = sbr.rel (0) target = $region9
    $region8: #{decoder_forward.13} parent=1 // pred_region
      _
    $region9: #{decoder_forward.13} parent=1 // pred_fallthru
      _
    // Predicated region
    $region10: #{decoder_forward.13} parent=1 // pred_check
      _
    $region11: #{decoder_forward.13} parent=1 // pred_check_branch
      %16 = sbr.rel (0) target = $region13
    $region12: #{decoder_forward.13} parent=1 // pred_region
      _
    $region13: #{decoder_forward.13} parent=1 // pred_fallthru
      _
    // Predicated region
    $region14: #{decoder_forward.13} parent=1 // pred_check
      _
    $region15: #{decoder_forward.13} parent=1 // pred_check_branch
      %18 = sbr.rel (0) target = $region17
    $region16: #{decoder_forward.13} parent=1 // pred_region
      _
    $region17: #{decoder_forward.13} parent=1 // pred_fallthru
      _
    // Predicated region
    $region18: #{decoder_forward.13} parent=1 // pred_check
      _
    $region19: #{decoder_forward.13} parent=1 // pred_check_branch
      %20 = sbr.rel (0) target = $region21
    $region20: #{decoder_forward.13} parent=1 // pred_region
      _
    $region21: #{decoder_forward.13} parent=1 // pred_fallthru
      _
    %v22 = vld [vmem:[%s0] sm:$0xff]
    %v23 = vld [vmem:[%s0 + $0x8] sm:$0xff]
    %v24 = vld [vmem:[%s1] sm:$0x1]
    %v25 = vld [vmem:[%s2] sm:$0x1]
    %vm26 = vcmask 261120
    %v27 = vsel %vm26, %v22, 0.0
    %28 = vadd.xlane.f32.xlu0 %v27
    %v29 = vpop.xlane.xlu0 %28
    %v30 = vsel %vm26, %v23, 0.0
    %31 = vadd.xlane.f32.xlu0 %v30
    %v32 = vpop.xlane.xlu0 %31
    %v33 = vrcp.pop 32.0
    %v34 = vmul.f32 %v29, %v33
    %v35 = vmul.f32 %v32, %v33
    %v36 = vsub.f32 %v22, %v34
    %v37 = vsub.f32 %v23, %v35
    %v38 = vmul.f32 %v36, %v36
    %v39 = vmul.f32 %v37, %v37
    %v40 = vsel %vm26, %v38, 0.0
    %41 = vadd.xlane.f32.xlu0 %v40
    %v42 = vpop.xlane.xlu0 %41
    %v43 = vsel %vm26, %v39, 0.0
    %44 = vadd.xlane.f32.xlu0 %v43
    %v45 = vpop.xlane.xlu0 %44
    %v46 = vmul.f32 %v42, %v33
    %v47 = vmul.f32 %v45, %v33
    %v48 = vadd.f32 %v46, 1e-05
    %v49 = vadd.f32 %v47, 1e-05
    %v50 = vrsqrt.pop %v48
    %v51 = vrsqrt.pop %v49
    %v52 = vmul.f32 %v36, %v50
    %v53 = vmul.f32 %v37, %v51
    %v55 = vlaneseq
    %v56 = vshrl.u32 %v55, 7
    %v57 = vsub.s32 0, %v56
    %v58 = vrot.slane %v24, %v57
    %v60 = vmul.f32 %v52, %v58
    %v61 = vmul.f32 %v53, %v58
    %v63 = vlaneseq
    %v64 = vshrl.u32 %v63, 7
    %v65 = vsub.s32 0, %v64
    %v66 = vrot.slane %v25, %v65
    %v68 = vadd.f32 %v60, %v66
    %v69 = vadd.f32 %v61, %v66
    %v70 = vpack.c.bf16 %v69, %v68
    %v71 = vld [vmem:[%s3] sm:$0xf]
    %v72 = vld [vmem:[%s3 + $0x4] sm:$0xf]
    %v73 = vld [vmem:[%s3 + $0x8] sm:$0xf]
    %v74 = vld [vmem:[%s3 + $0xc] sm:$0xf]
    %v75 = vld [vmem:[%s4] sm:$0x1]
    %v77 = vlaneseq
    %v78 = vshrl.u32 %v77, 7
    %v79 = vsub.s32 0, %v78
    %v80 = vrot.slane %v75, %v79
    %v86 = vunpack.c.l.b16 %v71
    %v87 = vunpack.c.l.b16 %v72
    %v88 = vunpack.c.l.b16 %v73
    %v89 = vunpack.c.l.b16 %v74
    %v90 = vpack.c.b16 %v87, %v86
    %v91 = vpack.c.b16 %v89, %v88
    %v95 = vsel %vm26, %v70, 0
    %97 = vmatprep.subr.bf16.mxu0 0
    %98 = vmatpush1.bf16.msra.mxu0 0
    %99 = vmatprep.subr.bf16.mxu0 0
    %100 = vmatpush1.bf16.msra.mxu0 0
    %101 = vmatprep.subr.bf16.mxu0 0
    %102 = vmatpush1.bf16.msra.mxu0 0
    %103 = vmatprep.subr.bf16.mxu0 0
    %104 = vmatpush1.bf16.msra.mxu0 0
    %105 = vmatprep.subr.bf16.mxu0 0
    %106 = vmatpush1.bf16.msra.mxu0 0
    %107 = vmatprep.subr.bf16.mxu0 0
    %108 = vmatpush1.bf16.msra.mxu0 0
    %109 = vmatprep.subr.bf16.mxu0 0
    %110 = vmatpush1.bf16.msra.mxu0 %v91
    %111 = vmatprep.subr.bf16.mxu0 0
    %112 = vmatpush1.bf16.msra.mxu0 %v90
    %113 = vmatprep.subr.bf16.mxu0 0
    %114 = vmatpush2.bf16.msra.mxu0 0
    %115 = vmatprep.subr.bf16.mxu0 0
    %116 = vmatpush2.bf16.msra.mxu0 0
    %117 = vmatprep.subr.bf16.mxu0 0
    %118 = vmatpush2.bf16.msra.mxu0 0
    %119 = vmatprep.subr.bf16.mxu0 0
    %120 = vmatpush2.bf16.msra.mxu0 0
    %121 = vmatprep.subr.bf16.mxu0 0
    %122 = vmatpush2.bf16.msra.mxu0 0
    %123 = vmatprep.subr.bf16.mxu0 0
    %124 = vmatpush2.bf16.msra.mxu0 0
    %125 = vmatprep.subr.bf16.mxu0 0
    %126 = vmatpush2.bf16.msra.mxu0 0
    %127 = vmatprep.subr.bf16.mxu0 0
    %128 = vmatpush2.bf16.msra.mxu0 0
    %129 = vmatprep.mubr.bf16.mxu0 0
    %130 = vmatmul.mubr.bf16.gmra.mxu0 %v95
    %v131 = vpop.f32.mrf.mxu0
    %v132 = vadd.f32 %v80, %v131
    %v133 = vpop.f32.mrf.mxu0
    %v134 = vpop.f32.mrf.mxu0
    %v135 = vadd.f32 %v80, %v134
    %v136 = vpop.f32.mrf.mxu0
    %137 = vdwg.mxu0
    %vm138 = vcmask 523264
    %139 = vst.msk [vmem:[#allocation2] sm:$0xff] %vm138, %v132
    %140 = vst.msk [vmem:[#allocation2 + $0x8] sm:$0xff] %vm138, %v135
    // Predicated region
    $region22: #{decoder_forward.13} parent=1 // pred_check
      _
    $region23: #{decoder_forward.13} parent=1 // pred_check_branch
      %142 = sbr.rel (0) target = $region25
    $region24: #{decoder_forward.13} parent=1 // pred_region
      %s144 = ssub.s32 256, 256
      %145 = vsyncadd [#allocation3], %s144
      %s146 = sshll.u32 [#allocation2], 4
      %s147 = int_to_ptr.vmem [resolvable:$true] %s146
      %152 = dma.vmem_to_hbm [thread:$0]  %s147, 256, %s5, [#allocation3], 128, 128, 8
    $region25: #{decoder_forward.13} parent=1 // pred_fallthru
      _
    // Predicated region
    $region26: #{decoder_forward.13} parent=1 // pred_check
      _
    $region27: #{decoder_forward.13} parent=1 // pred_check_branch
      %154 = sbr.rel (0) target = $region29
    $region28: #{decoder_forward.13} parent=1 // pred_region
      %155 = dma.done [#allocation3], 256
    $region29: #{decoder_forward.13} parent=1 // pred_fallthru
      _
    %156 = vsyncpa [#allocation3], 1

// kernel: decoder_forward.7
$region0: #{decoder_forward.7}
  #allocation0 [shape = 'u32[]', space=smem, size = 0x4, offset = 0x4, fixed_abs, tag = 'smem constant byte address 0x4 - core index']
  #allocation1 [shape = 'u32[144,128]{1,0:T(1,128)}', space=vmem, size = 0x12000, scoped, tag = 'internal scratch']
  %s0 = inlined_call_operand.vmem [shape: f32[16,32], index: 0, kind: input, shape index: {}]
  %s1 = inlined_call_operand.vmem [shape: f32[1,32], index: 1, kind: input, shape index: {}]
  %s2 = inlined_call_operand.vmem [shape: f32[1,32], index: 2, kind: input, shape index: {}]
  %s3 = inlined_call_operand.vmem [shape: bf16[32,32], index: 3, kind: input, shape index: {}]
  %s4 = inlined_call_operand.vmem [shape: f32[1,32], index: 4, kind: input, shape index: {}]
  %s5 = inlined_call_operand.vmem [shape: bf16[32,32], index: 5, kind: input, shape index: {}]
  %s6 = inlined_call_operand.vmem [shape: f32[1,32], index: 6, kind: input, shape index: {}]
  %s7 = inlined_call_operand.vmem [shape: bf16[32,32], index: 7, kind: input, shape index: {}]
  %s8 = inlined_call_operand.vmem [shape: f32[1,32], index: 8, kind: input, shape index: {}]
  %s9 = inlined_call_operand.vmem [shape: f32[16,32], index: 9, kind: output, shape index: {0}]
  %s10 = inlined_call_operand.vmem [shape: f32[16,32], index: 10, kind: output, shape index: {1}]
  %s11 = inlined_call_operand.vmem [shape: f32[16,32], index: 11, kind: output, shape index: {2}]
  %12 = xla_tuple %s9, %s10, %s11
  %s13 = sld [smem:[#allocation0]]
  $region62: #{decoder_forward.7} parent=0
    _
  %s15 = ssub.s32 1, %s13
  %s16 = scalar_select 0, %s15, %s13
  // Predicated region
  $region2: #{decoder_forward.7} parent=0 // pred_check
    _
  $region3: #{decoder_forward.7} parent=0 // pred_check_branch
    %18 = sbr.rel (0) target = $region5
  $region4: #{decoder_forward.7} parent=0 // pred_region
    _
  $region5: #{decoder_forward.7} parent=0 // pred_fallthru
    _
  // Predicated region
  $region6: #{decoder_forward.7} parent=0 // pred_check
    _
  $region7: #{decoder_forward.7} parent=0 // pred_check_branch
    %20 = sbr.rel (0) target = $region9
  $region8: #{decoder_forward.7} parent=0 // pred_region
    _
  $region9: #{decoder_forward.7} parent=0 // pred_fallthru
    _
  // Predicated region
  $region10: #{decoder_forward.7} parent=0 // pred_check
    _
  $region11: #{decoder_forward.7} parent=0 // pred_check_branch
    %22 = sbr.rel (0) target = $region13
  $region12: #{decoder_forward.7} parent=0 // pred_region
    _
  $region13: #{decoder_forward.7} parent=0 // pred_fallthru
    _
  // Predicated region
  $region14: #{decoder_forward.7} parent=0 // pred_check
    _
  $region15: #{decoder_forward.7} parent=0 // pred_check_branch
    %24 = sbr.rel (0) target = $region17
  $region16: #{decoder_forward.7} parent=0 // pred_region
    _
  $region17: #{decoder_forward.7} parent=0 // pred_fallthru
    _
  // Predicated region
  $region18: #{decoder_forward.7} parent=0 // pred_check
    _
  $region19: #{decoder_forward.7} parent=0 // pred_check_branch
    %26 = sbr.rel (0) target = $region21
  $region20: #{decoder_forward.7} parent=0 // pred_region
    _
  $region21: #{decoder_forward.7} parent=0 // pred_fallthru
    _
  // Predicated region
  $region22: #{decoder_forward.7} parent=0 // pred_check
    _
  $region23: #{decoder_forward.7} parent=0 // pred_check_branch
    %28 = sbr.rel (0) target = $region25
  $region24: #{decoder_forward.7} parent=0 // pred_region
    _
  $region25: #{decoder_forward.7} parent=0 // pred_fallthru
    _
  // Predicated region
  $region26: #{decoder_forward.7} parent=0 // pred_check
    _
  $region27: #{decoder_forward.7} parent=0 // pred_check_branch
    %30 = sbr.rel (0) target = $region29
  $region28: #{decoder_forward.7} parent=0 // pred_region
    _
  $region29: #{decoder_forward.7} parent=0 // pred_fallthru
    _
  // Predicated region
  $region30: #{decoder_forward.7} parent=0 // pred_check
    _
  $region31: #{decoder_forward.7} parent=0 // pred_check_branch
    %32 = sbr.rel (0) target = $region33
  $region32: #{decoder_forward.7} parent=0 // pred_region
    _
  $region33: #{decoder_forward.7} parent=0 // pred_fallthru
    _
  // Predicated region
  $region34: #{decoder_forward.7} parent=0 // pred_check
    _
  $region35: #{decoder_forward.7} parent=0 // pred_check_branch
    %34 = sbr.rel (0) target = $region37
  $region36: #{decoder_forward.7} parent=0 // pred_region
    _
  $region37: #{decoder_forward.7} parent=0 // pred_fallthru
    _
  %v36 = vld [vmem:[%s0] sm:$0xff]
  %v37 = vld [vmem:[%s0 + $0x8] sm:$0xff]
  %v38 = vld [vmem:[%s1] sm:$0x1]
  %v39 = vld [vmem:[%s2] sm:$0x1]
  %vm40 = vcmask 261120
  %v41 = vsel %vm40, %v36, 0.0
  %42 = vadd.xlane.f32.xlu0 %v41
  %v43 = vpop.xlane.xlu0 %42
  %v44 = vsel %vm40, %v37, 0.0
  %45 = vadd.xlane.f32.xlu0 %v44
  %v46 = vpop.xlane.xlu0 %45
  %v47 = vrcp.pop 32.0
  %v48 = vmul.f32 %v43, %v47
  %v49 = vmul.f32 %v46, %v47
  %v50 = vsub.f32 %v36, %v48
  %v51 = vsub.f32 %v37, %v49
  %v52 = vmul.f32 %v50, %v50
  %v53 = vmul.f32 %v51, %v51
  %v54 = vsel %vm40, %v52, 0.0
  %55 = vadd.xlane.f32.xlu0 %v54
  %v56 = vpop.xlane.xlu0 %55
  %v57 = vsel %vm40, %v53, 0.0
  %58 = vadd.xlane.f32.xlu0 %v57
  %v59 = vpop.xlane.xlu0 %58
  %v60 = vmul.f32 %v56, %v47
  %v61 = vmul.f32 %v59, %v47
  %v62 = vadd.f32 %v60, 1e-05
  %v63 = vadd.f32 %v61, 1e-05
  %v64 = vrsqrt.pop %v62
  %v65 = vrsqrt.pop %v63
  %v66 = vmul.f32 %v50, %v64
  %v67 = vmul.f32 %v51, %v65
  %v69 = vlaneseq
  %v70 = vshrl.u32 %v69, 7
  %v71 = vsub.s32 0, %v70
  %v72 = vrot.slane %v38, %v71
  %v74 = vmul.f32 %v66, %v72
  %v75 = vmul.f32 %v67, %v72
  %v77 = vlaneseq
  %v78 = vshrl.u32 %v77, 7
  %v79 = vsub.s32 0, %v78
  %v80 = vrot.slane %v39, %v79
  %v82 = vadd.f32 %v74, %v80
  %v83 = vadd.f32 %v75, %v80
  %v84 = vpack.c.bf16 %v83, %v82
  %v85 = vld [vmem:[%s3] sm:$0xf]
  %v86 = vld [vmem:[%s3 + $0x4] sm:$0xf]
  %v87 = vld [vmem:[%s3 + $0x8] sm:$0xf]
  %v88 = vld [vmem:[%s3 + $0xc] sm:$0xf]
  %v89 = vld [vmem:[%s4] sm:$0x1]
  %v91 = vlaneseq
  %v92 = vshrl.u32 %v91, 7
  %v93 = vsub.s32 0, %v92
  %v94 = vrot.slane %v89, %v93
  %v100 = vunpack.c.l.b16 %v85
  %v101 = vunpack.c.l.b16 %v86
  %v102 = vunpack.c.l.b16 %v87
  %v103 = vunpack.c.l.b16 %v88
  %v104 = vpack.c.b16 %v101, %v100
  %v105 = vpack.c.b16 %v103, %v102
  %v109 = vsel %vm40, %v84, 0
  %111 = vmatprep.subr.bf16.mxu0 0
  %112 = vmatpush1.bf16.msra.mxu0 0
  %113 = vmatprep.subr.bf16.mxu0 0
  %114 = vmatpush1.bf16.msra.mxu0 0
  %115 = vmatprep.subr.bf16.mxu0 0
  %116 = vmatpush1.bf16.msra.mxu0 0
  %117 = vmatprep.subr.bf16.mxu0 0
  %118 = vmatpush1.bf16.msra.mxu0 0
  %119 = vmatprep.subr.bf16.mxu0 0
  %120 = vmatpush1.bf16.msra.mxu0 0
  %121 = vmatprep.subr.bf16.mxu0 0
  %122 = vmatpush1.bf16.msra.mxu0 0
  %123 = vmatprep.subr.bf16.mxu0 0
  %124 = vmatpush1.bf16.msra.mxu0 %v105
  %125 = vmatprep.subr.bf16.mxu0 0
  %126 = vmatpush1.bf16.msra.mxu0 %v104
  %127 = vmatprep.subr.bf16.mxu0 0
  %128 = vmatpush2.bf16.msra.mxu0 0
  %129 = vmatprep.subr.bf16.mxu0 0
  %130 = vmatpush2.bf16.msra.mxu0 0
  %131 = vmatprep.subr.bf16.mxu0 0
  %132 = vmatpush2.bf16.msra.mxu0 0
  %133 = vmatprep.subr.bf16.mxu0 0
  %134 = vmatpush2.bf16.msra.mxu0 0
  %135 = vmatprep.subr.bf16.mxu0 0
  %136 = vmatpush2.bf16.msra.mxu0 0
  %137 = vmatprep.subr.bf16.mxu0 0
  %138 = vmatpush2.bf16.msra.mxu0 0
  %139 = vmatprep.subr.bf16.mxu0 0
  %140 = vmatpush2.bf16.msra.mxu0 0
  %141 = vmatprep.subr.bf16.mxu0 0
  %142 = vmatpush2.bf16.msra.mxu0 0
  %143 = vmatprep.mubr.bf16.mxu0 0
  %144 = vmatmul.mubr.bf16.gmra.mxu0 %v109
  %v145 = vpop.f32.mrf.mxu0
  %v146 = vadd.f32 %v94, %v145
  %v147 = vpop.f32.mrf.mxu0
  %v148 = vpop.f32.mrf.mxu0
  %v149 = vadd.f32 %v94, %v148
  %v150 = vpop.f32.mrf.mxu0
  %151 = vdwg.mxu0
  %152 = vst.msk [vmem:[%s9] sm:$0xff] %vm40, %v146
  %153 = vst.msk [vmem:[%s9 + $0x8] sm:$0xff] %vm40, %v149
  %v154 = vld [vmem:[%s5] sm:$0xf]
  %v155 = vld [vmem:[%s5 + $0x4] sm:$0xf]
  %v156 = vld [vmem:[%s5 + $0x8] sm:$0xf]
  %v157 = vld [vmem:[%s5 + $0xc] sm:$0xf]
  %v158 = vld [vmem:[%s6] sm:$0x1]
  %v160 = vlaneseq
  %v161 = vshrl.u32 %v160, 7
  %v162 = vsub.s32 0, %v161
  %v163 = vrot.slane %v158, %v162
  %v169 = vunpack.c.l.b16 %v154
  %v170 = vunpack.c.l.b16 %v155
  %v171 = vunpack.c.l.b16 %v156
  %v172 = vunpack.c.l.b16 %v157
  %v173 = vpack.c.b16 %v170, %v169
  %v174 = vpack.c.b16 %v172, %v171
  %177 = vmatprep.subr.bf16.mxu0 0
  %178 = vmatpush1.bf16.msra.mxu0 0
  %179 = vmatprep.subr.bf16.mxu0 0
  %180 = vmatpush1.bf16.msra.mxu0 0
  %181 = vmatprep.subr.bf16.mxu0 0
  %182 = vmatpush1.bf16.msra.mxu0 0
  %183 = vmatprep.subr.bf16.mxu0 0
  %184 = vmatpush1.bf16.msra.mxu0 0
  %185 = vmatprep.subr.bf16.mxu0 0
  %186 = vmatpush1.bf16.msra.mxu0 0
  %187 = vmatprep.subr.bf16.mxu0 0
  %188 = vmatpush1.bf16.msra.mxu0 0
  %189 = vmatprep.subr.bf16.mxu0 0
  %190 = vmatpush1.bf16.msra.mxu0 %v174
  %191 = vmatprep.subr.bf16.mxu0 0
  %192 = vmatpush1.bf16.msra.mxu0 %v173
  %193 = vmatprep.subr.bf16.mxu0 0
  %194 = vmatpush2.bf16.msra.mxu0 0
  %195 = vmatprep.subr.bf16.mxu0 0
  %196 = vmatpush2.bf16.msra.mxu0 0
  %197 = vmatprep.subr.bf16.mxu0 0
  %198 = vmatpush2.bf16.msra.mxu0 0
  %199 = vmatprep.subr.bf16.mxu0 0
  %200 = vmatpush2.bf16.msra.mxu0 0
  %201 = vmatprep.subr.bf16.mxu0 0
  %202 = vmatpush2.bf16.msra.mxu0 0
  %203 = vmatprep.subr.bf16.mxu0 0
  %204 = vmatpush2.bf16.msra.mxu0 0
  %205 = vmatprep.subr.bf16.mxu0 0
  %206 = vmatpush2.bf16.msra.mxu0 0
  %207 = vmatprep.subr.bf16.mxu0 0
  %208 = vmatpush2.bf16.msra.mxu0 0
  %209 = vmatprep.mubr.bf16.mxu0 0
  %210 = vmatmul.mubr.bf16.gmra.mxu0 %v109
  %v211 = vpop.f32.mrf.mxu0
  %v212 = vadd.f32 %v163, %v211
  %v213 = vpop.f32.mrf.mxu0
  %v214 = vpop.f32.mrf.mxu0
  %v215 = vadd.f32 %v163, %v214
  %v216 = vpop.f32.mrf.mxu0
  %217 = vdwg.mxu0
  %218 = vst.msk [vmem:[%s10] sm:$0xff] %vm40, %v212
  %219 = vst.msk [vmem:[%s10 + $0x8] sm:$0xff] %vm40, %v215
  %v220 = vld [vmem:[%s7] sm:$0xf]
  %v221 = vld [vmem:[%s7 + $0x4] sm:$0xf]
  %v222 = vld [vmem:[%s7 + $0x8] sm:$0xf]
  %v223 = vld [vmem:[%s7 + $0xc] sm:$0xf]
  %v224 = vld [vmem:[%s8] sm:$0x1]
  %v226 = vlaneseq
  %v227 = vshrl.u32 %v226, 7
  %v228 = vsub.s32 0, %v227
  %v229 = vrot.slane %v224, %v228
  %v235 = vunpack.c.l.b16 %v220
  %v236 = vunpack.c.l.b16 %v221
  %v237 = vunpack.c.l.b16 %v222
  %v238 = vunpack.c.l.b16 %v223
  %v239 = vpack.c.b16 %v236, %v235
  %v240 = vpack.c.b16 %v238, %v237
  %243 = vmatprep.subr.bf16.mxu0 0
  %244 = vmatpush1.bf16.msra.mxu0 0
  %245 = vmatprep.subr.bf16.mxu0 0
  %246 = vmatpush1.bf16.msra.mxu0 0
  %247 = vmatprep.subr.bf16.mxu0 0
  %248 = vmatpush1.bf16.msra.mxu0 0
  %249 = vmatprep.subr.bf16.mxu0 0
  %250 = vmatpush1.bf16.msra.mxu0 0
  %251 = vmatprep.subr.bf16.mxu0 0
  %252 = vmatpush1.bf16.msra.mxu0 0
  %253 = vmatprep.subr.bf16.mxu0 0
  %254 = vmatpush1.bf16.msra.mxu0 0
  %255 = vmatprep.subr.bf16.mxu0 0
  %256 = vmatpush1.bf16.msra.mxu0 %v240
  %257 = vmatprep.subr.bf16.mxu0 0
  %258 = vmatpush1.bf16.msra.mxu0 %v239
  %259 = vmatprep.subr.bf16.mxu0 0
  %260 = vmatpush2.bf16.msra.mxu0 0
  %261 = vmatprep.subr.bf16.mxu0 0
  %262 = vmatpush2.bf16.msra.mxu0 0
  %263 = vmatprep.subr.bf16.mxu0 0
  %264 = vmatpush2.bf16.msra.mxu0 0
  %265 = vmatprep.subr.bf16.mxu0 0
  %266 = vmatpush2.bf16.msra.mxu0 0
  %267 = vmatprep.subr.bf16.mxu0 0
  %268 = vmatpush2.bf16.msra.mxu0 0
  %269 = vmatprep.subr.bf16.mxu0 0
  %270 = vmatpush2.bf16.msra.mxu0 0
  %271 = vmatprep.subr.bf16.mxu0 0
  %272 = vmatpush2.bf16.msra.mxu0 0
  %273 = vmatprep.subr.bf16.mxu0 0
  %274 = vmatpush2.bf16.msra.mxu0 0
  %275 = vmatprep.mubr.bf16.mxu0 0
  %276 = vmatmul.mubr.bf16.gmra.mxu0 %v109
  %v277 = vpop.f32.mrf.mxu0
  %v278 = vadd.f32 %v229, %v277
  %v279 = vpop.f32.mrf.mxu0
  %v280 = vpop.f32.mrf.mxu0
  %v281 = vadd.f32 %v229, %v280
  %v282 = vpop.f32.mrf.mxu0
  %283 = vdwg.mxu0
  %284 = vst.msk [vmem:[%s11] sm:$0xff] %vm40, %v278
  %285 = vst.msk [vmem:[%s11 + $0x8] sm:$0xff] %vm40, %v281
  // Predicated region
  $region38: #{decoder_forward.7} parent=0 // pred_check
    _
  $region39: #{decoder_forward.7} parent=0 // pred_check_branch
    %287 = sbr.rel (0) target = $region41
  $region40: #{decoder_forward.7} parent=0 // pred_region
    _
  $region41: #{decoder_forward.7} parent=0 // pred_fallthru
    _
  // Predicated region
  $region42: #{decoder_forward.7} parent=0 // pred_check
    _
  $region43: #{decoder_forward.7} parent=0 // pred_check_branch
    %289 = sbr.rel (0) target = $region45
  $region44: #{decoder_forward.7} parent=0 // pred_region
    _
  $region45: #{decoder_forward.7} parent=0 // pred_fallthru
    _
  // Predicated region
  $region46: #{decoder_forward.7} parent=0 // pred_check
    _
  $region47: #{decoder_forward.7} parent=0 // pred_check_branch
    %291 = sbr.rel (0) target = $region49
  $region48: #{decoder_forward.7} parent=0 // pred_region
    _
  $region49: #{decoder_forward.7} parent=0 // pred_fallthru
    _
  // Predicated region
  $region50: #{decoder_forward.7} parent=0 // pred_check
    _
  $region51: #{decoder_forward.7} parent=0 // pred_check_branch
    %293 = sbr.rel (0) target = $region53
  $region52: #{decoder_forward.7} parent=0 // pred_region
    _
  $region53: #{decoder_forward.7} parent=0 // pred_fallthru
    _
  // Predicated region
  $region54: #{decoder_forward.7} parent=0 // pred_check
    _
  $region55: #{decoder_forward.7} parent=0 // pred_check_branch
    %295 = sbr.rel (0) target = $region57
  $region56: #{decoder_forward.7} parent=0 // pred_region
    _
  $region57: #{decoder_forward.7} parent=0 // pred_fallthru
    _
  // Predicated region
  $region58: #{decoder_forward.7} parent=0 // pred_check
    _
  $region59: #{decoder_forward.7} parent=0 // pred_check_branch
    %297 = sbr.rel (0) target = $region61
  $region60: #{decoder_forward.7} parent=0 // pred_region
    _
  $region61: #{decoder_forward.7} parent=0 // pred_fallthru
    _

// kernel: decoder_forward.9
$region0: #{decoder_forward.9}
  #allocation0 [shape = 'u32[]', space=smem, size = 0x4, offset = 0x4, fixed_abs, tag = 'smem constant byte address 0x4 - core index']
  #allocation1 [shape = 'u32[144,128]{1,0:T(1,128)}', space=vmem, size = 0x12000, scoped, tag = 'internal scratch']
  #allocation2 [shape = 'bf16[16,32]{1,0:T(8,128)(2,1)}', space=vmem, size = 0x1000, scoped, tag = 'scratch operand']
  #allocation3 [shape = 'f32[16,32]{1,0:T(8,128)}', space=vmem, size = 0x2000, scoped, tag = 'scratch operand']
  %s0 = inlined_call_operand.vmem [shape: f32[16,32], index: 0, kind: input, shape index: {}]
  %s1 = inlined_call_operand.vmem [shape: f32[1,32], index: 1, kind: input, shape index: {}]
  %s2 = inlined_call_operand.vmem [shape: f32[1,32], index: 2, kind: input, shape index: {}]
  %s3 = inlined_call_operand.vmem [shape: bf16[32,128], index: 3, kind: input, shape index: {}]
  %s4 = inlined_call_operand.vmem [shape: f32[1,128], index: 4, kind: input, shape index: {}]
  %s5 = inlined_call_operand.vmem [shape: bf16[128,32], index: 5, kind: input, shape index: {}]
  %s6 = inlined_call_operand.vmem [shape: f32[1,32], index: 6, kind: input, shape index: {}]
  %s7 = inlined_call_operand.vmem [shape: f32[16,32], index: 7, kind: output, shape index: {}]
  %s8 = sld [smem:[#allocation0]]
  $region46: #{decoder_forward.9} parent=0
    _
  %s10 = ssub.s32 1, %s8
  %s11 = scalar_select 0, %s10, %s8
  // Predicated region
  $region2: #{decoder_forward.9} parent=0 // pred_check
    _
  $region3: #{decoder_forward.9} parent=0 // pred_check_branch
    %13 = sbr.rel (0) target = $region5
  $region4: #{decoder_forward.9} parent=0 // pred_region
    _
  $region5: #{decoder_forward.9} parent=0 // pred_fallthru
    _
  // Predicated region
  $region6: #{decoder_forward.9} parent=0 // pred_check
    _
  $region7: #{decoder_forward.9} parent=0 // pred_check_branch
    %15 = sbr.rel (0) target = $region9
  $region8: #{decoder_forward.9} parent=0 // pred_region
    _
  $region9: #{decoder_forward.9} parent=0 // pred_fallthru
    _
  // Predicated region
  $region10: #{decoder_forward.9} parent=0 // pred_check
    _
  $region11: #{decoder_forward.9} parent=0 // pred_check_branch
    %17 = sbr.rel (0) target = $region13
  $region12: #{decoder_forward.9} parent=0 // pred_region
    _
  $region13: #{decoder_forward.9} parent=0 // pred_fallthru
    _
  // Predicated region
  $region14: #{decoder_forward.9} parent=0 // pred_check
    _
  $region15: #{decoder_forward.9} parent=0 // pred_check_branch
    %19 = sbr.rel (0) target = $region17
  $region16: #{decoder_forward.9} parent=0 // pred_region
    _
  $region17: #{decoder_forward.9} parent=0 // pred_fallthru
    _
  // Predicated region
  $region18: #{decoder_forward.9} parent=0 // pred_check
    _
  $region19: #{decoder_forward.9} parent=0 // pred_check_branch
    %21 = sbr.rel (0) target = $region21
  $region20: #{decoder_forward.9} parent=0 // pred_region
    _
  $region21: #{decoder_forward.9} parent=0 // pred_fallthru
    _
  // Predicated region
  $region22: #{decoder_forward.9} parent=0 // pred_check
    _
  $region23: #{decoder_forward.9} parent=0 // pred_check_branch
    %23 = sbr.rel (0) target = $region25
  $region24: #{decoder_forward.9} parent=0 // pred_region
    _
  $region25: #{decoder_forward.9} parent=0 // pred_fallthru
    _
  // Predicated region
  $region26: #{decoder_forward.9} parent=0 // pred_check
    _
  $region27: #{decoder_forward.9} parent=0 // pred_check_branch
    %25 = sbr.rel (0) target = $region29
  $region28: #{decoder_forward.9} parent=0 // pred_region
    _
  $region29: #{decoder_forward.9} parent=0 // pred_fallthru
    _
  %p27 = scmp.eq.s32.totalorder 0, 0
  // Predicated region
  $region30: #{decoder_forward.9} parent=0 // pred_check
    %p28 = pneg %p27
  $region31: #{decoder_forward.9} parent=0 // pred_check_branch
    %30 = sbr.rel (%p28) target = $region33
  $region32: #{decoder_forward.9} parent=0 // pred_region
    %v31 = vld [vmem:[%s0] sm:$0xff]
    %v32 = vld [vmem:[%s0 + $0x8] sm:$0xff]
    %v33 = vld [vmem:[%s1] sm:$0x1]
    %v34 = vld [vmem:[%s2] sm:$0x1]
    %vm35 = vcmask 261120
    %v36 = vsel %vm35, %v31, 0.0
    %37 = vadd.xlane.f32.xlu0 %v36
    %v38 = vpop.xlane.xlu0 %37
    %v39 = vsel %vm35, %v32, 0.0
    %40 = vadd.xlane.f32.xlu0 %v39
    %v41 = vpop.xlane.xlu0 %40
    %v42 = vrcp.pop 32.0
    %v43 = vmul.f32 %v38, %v42
    %v44 = vmul.f32 %v41, %v42
    %v45 = vsub.f32 %v31, %v43
    %v46 = vsub.f32 %v32, %v44
    %v47 = vmul.f32 %v45, %v45
    %v48 = vmul.f32 %v46, %v46
    %v49 = vsel %vm35, %v47, 0.0
    %50 = vadd.xlane.f32.xlu0 %v49
    %v51 = vpop.xlane.xlu0 %50
    %v52 = vsel %vm35, %v48, 0.0
    %53 = vadd.xlane.f32.xlu0 %v52
    %v54 = vpop.xlane.xlu0 %53
    %v55 = vmul.f32 %v51, %v42
    %v56 = vmul.f32 %v54, %v42
    %v57 = vadd.f32 %v55, 1e-05
    %v58 = vadd.f32 %v56, 1e-05
    %v59 = vrsqrt.pop %v57
    %v60 = vrsqrt.pop %v58
    %v61 = vmul.f32 %v45, %v59
    %v62 = vmul.f32 %v46, %v60
    %v64 = vlaneseq
    %v65 = vshrl.u32 %v64, 7
    %v66 = vsub.s32 0, %v65
    %v67 = vrot.slane %v33, %v66
    %v69 = vmul.f32 %v61, %v67
    %v70 = vmul.f32 %v62, %v67
    %v72 = vlaneseq
    %v73 = vshrl.u32 %v72, 7
    %v74 = vsub.s32 0, %v73
    %v75 = vrot.slane %v34, %v74
    %v77 = vadd.f32 %v69, %v75
    %v78 = vadd.f32 %v70, %v75
    %v79 = vpack.c.bf16 %v78, %v77
    %v81 = vunpack.c.l.b16 %v79
    %v82 = vunpack.c.h.b16 %v79
    %v83 = vpack.c.b16 %v81, %v81
    %v84 = vpack.c.b16 %v82, %v82
    %vm87 = vcmask 257024
    %88 = vst.msk [vmem:[#allocation2] sm:$0xf] %vm87, %v83
    %89 = vst.msk [vmem:[#allocation2 + $0x4] sm:$0xf] %vm87, %v84
    %90 = vst.msk [vmem:[#allocation3] sm:$0xff] %vm35, 0.0
    %91 = vst.msk [vmem:[#allocation3 + $0x8] sm:$0xff] %vm35, 0.0
  $region33: #{decoder_forward.9} parent=0 // pred_fallthru
    _
  %v92 = vld [vmem:[#allocation2] sm:$0xf]
  %v93 = vld [vmem:[#allocation2 + $0x4] sm:$0xf]
  %v94 = vld [vmem:[%s3] sm:$0xf]
  %v95 = vld [vmem:[%s3 + $0x4] sm:$0xf]
  %v96 = vld [vmem:[%s3 + $0x8] sm:$0xf]
  %v97 = vld [vmem:[%s3 + $0xc] sm:$0xf]
  %v98 = vld [vmem:[%s4] sm:$0x1]
  %v100 = vlaneseq
  %v101 = vshrl.u32 %v100, 7
  %v102 = vsub.s32 0, %v101
  %v103 = vrot.slane %v98, %v102
  %v107 = vunpack.c.l.b16 %v92
  %v108 = vunpack.c.l.b16 %v93
  %v109 = vpack.c.b16 %v108, %v107
  %v114 = vunpack.c.l.b16 %v94
  %v115 = vunpack.c.l.b16 %v95
  %v116 = vunpack.c.l.b16 %v96
  %v117 = vunpack.c.l.b16 %v97
  %v118 = vpack.c.b16 %v115, %v114
  %v119 = vpack.c.b16 %v117, %v116
  %vm122 = vcmask 261120
  %v124 = vsel %vm122, %v109, 0
  %126 = vmatprep.subr.bf16.mxu0 0
  %127 = vmatpush1.bf16.msra.mxu0 0
  %128 = vmatprep.subr.bf16.mxu0 0
  %129 = vmatpush1.bf16.msra.mxu0 0
  %130 = vmatprep.subr.bf16.mxu0 0
  %131 = vmatpush1.bf16.msra.mxu0 0
  %132 = vmatprep.subr.bf16.mxu0 0
  %133 = vmatpush1.bf16.msra.mxu0 0
  %134 = vmatprep.subr.bf16.mxu0 0
  %135 = vmatpush1.bf16.msra.mxu0 0
  %136 = vmatprep.subr.bf16.mxu0 0
  %137 = vmatpush1.bf16.msra.mxu0 0
  %138 = vmatprep.subr.bf16.mxu0 0
  %139 = vmatpush1.bf16.msra.mxu0 %v119
  %140 = vmatprep.subr.bf16.mxu0 0
  %141 = vmatpush1.bf16.msra.mxu0 %v118
  %142 = vmatprep.subr.bf16.mxu0 0
  %143 = vmatpush2.bf16.msra.mxu0 0
  %144 = vmatprep.subr.bf16.mxu0 0
  %145 = vmatpush2.bf16.msra.mxu0 0
  %146 = vmatprep.subr.bf16.mxu0 0
  %147 = vmatpush2.bf16.msra.mxu0 0
  %148 = vmatprep.subr.bf16.mxu0 0
  %149 = vmatpush2.bf16.msra.mxu0 0
  %150 = vmatprep.subr.bf16.mxu0 0
  %151 = vmatpush2.bf16.msra.mxu0 0
  %152 = vmatprep.subr.bf16.mxu0 0
  %153 = vmatpush2.bf16.msra.mxu0 0
  %154 = vmatprep.subr.bf16.mxu0 0
  %155 = vmatpush2.bf16.msra.mxu0 0
  %156 = vmatprep.subr.bf16.mxu0 0
  %157 = vmatpush2.bf16.msra.mxu0 0
  %158 = vmatprep.mubr.bf16.mxu0 0
  %159 = vmatmul.mubr.bf16.gmra.mxu0 %v124
  %v160 = vpop.f32.mrf.mxu0
  %v161 = vadd.f32 %v103, %v160
  %v162 = vpop.f32.mrf.mxu0
  %v163 = vpop.f32.mrf.mxu0
  %v164 = vadd.f32 %v103, %v163
  %v165 = vpop.f32.mrf.mxu0
  %166 = vdwg.mxu0
  %v167 = vmul.f32 %v161, %v161
  %v168 = vmul.f32 %v164, %v164
  %v169 = vmul.f32 %v161, %v167
  %v170 = vmul.f32 %v164, %v168
  %v171 = vmul.f32 %v169, 0.044715
  %v172 = vmul.f32 %v170, 0.044715
  %v173 = vadd.f32 %v161, %v171
  %v174 = vadd.f32 %v164, %v172
  %v175 = vmul.f32 %v173, 0.7978846
  %v176 = vmul.f32 %v174, 0.7978846
  %v177 = vtanh.pop %v175
  %v178 = vtanh.pop %v176
  %v179 = vadd.f32 %v177, 1.0
  %v180 = vadd.f32 %v178, 1.0
  %v181 = vmul.f32 %v179, 0.5
  %v182 = vmul.f32 %v180, 0.5
  %v183 = vmul.f32 %v161, %v181
  %v184 = vmul.f32 %v164, %v182
  %v185 = vld [vmem:[#allocation3] sm:$0xff]
  %v186 = vld [vmem:[#allocation3 + $0x8] sm:$0xff]
  %v187 = vpack.c.bf16 %v184, %v183
  %v188 = vld [vmem:[%s5] sm:$0xf]
  %v189 = vld [vmem:[%s5 + $0x4] sm:$0xf]
  %v190 = vld [vmem:[%s5 + $0x8] sm:$0xf]
  %v191 = vld [vmem:[%s5 + $0xc] sm:$0xf]
  %v192 = vld [vmem:[%s5 + $0x10] sm:$0xf]
  %v193 = vld [vmem:[%s5 + $0x14] sm:$0xf]
  %v194 = vld [vmem:[%s5 + $0x18] sm:$0xf]
  %v195 = vld [vmem:[%s5 + $0x1c] sm:$0xf]
  %v196 = vld [vmem:[%s5 + $0x20] sm:$0xf]
  %v197 = vld [vmem:[%s5 + $0x24] sm:$0xf]
  %v198 = vld [vmem:[%s5 + $0x28] sm:$0xf]
  %v199 = vld [vmem:[%s5 + $0x2c] sm:$0xf]
  %v200 = vld [vmem:[%s5 + $0x30] sm:$0xf]
  %v201 = vld [vmem:[%s5 + $0x34] sm:$0xf]
  %v202 = vld [vmem:[%s5 + $0x38] sm:$0xf]
  %v203 = vld [vmem:[%s5 + $0x3c] sm:$0xf]
  %v220 = vunpack.c.l.b16 %v188
  %v221 = vunpack.c.l.b16 %v189
  %v222 = vunpack.c.l.b16 %v190
  %v223 = vunpack.c.l.b16 %v191
  %v224 = vunpack.c.l.b16 %v192
  %v225 = vunpack.c.l.b16 %v193
  %v226 = vunpack.c.l.b16 %v194
  %v227 = vunpack.c.l.b16 %v195
  %v228 = vunpack.c.l.b16 %v196
  %v229 = vunpack.c.l.b16 %v197
  %v230 = vunpack.c.l.b16 %v198
  %v231 = vunpack.c.l.b16 %v199
  %v232 = vunpack.c.l.b16 %v200
  %v233 = vunpack.c.l.b16 %v201
  %v234 = vunpack.c.l.b16 %v202
  %v235 = vunpack.c.l.b16 %v203
  %v236 = vpack.c.b16 %v221, %v220
  %v237 = vpack.c.b16 %v223, %v222
  %v238 = vpack.c.b16 %v225, %v224
  %v239 = vpack.c.b16 %v227, %v226
  %v240 = vpack.c.b16 %v229, %v228
  %v241 = vpack.c.b16 %v231, %v230
  %v242 = vpack.c.b16 %v233, %v232
  %v243 = vpack.c.b16 %v235, %v234
  %252 = vmatprep.subr.bf16.mxu0 0
  %253 = vmatpush1.bf16.msra.mxu0 %v243
  %254 = vmatprep.subr.bf16.mxu0 0
  %255 = vmatpush1.bf16.msra.mxu0 %v242
  %256 = vmatprep.subr.bf16.mxu0 0
  %257 = vmatpush1.bf16.msra.mxu0 %v241
  %258 = vmatprep.subr.bf16.mxu0 0
  %259 = vmatpush1.bf16.msra.mxu0 %v240
  %260 = vmatprep.subr.bf16.mxu0 0
  %261 = vmatpush1.bf16.msra.mxu0 %v239
  %262 = vmatprep.subr.bf16.mxu0 0
  %263 = vmatpush1.bf16.msra.mxu0 %v238
  %264 = vmatprep.subr.bf16.mxu0 0
  %265 = vmatpush1.bf16.msra.mxu0 %v237
  %266 = vmatprep.subr.bf16.mxu0 0
  %267 = vmatpush1.bf16.msra.mxu0 %v236
  %268 = vmatprep.subr.bf16.mxu0 0
  %269 = vmatpush2.bf16.msra.mxu0 0
  %270 = vmatprep.subr.bf16.mxu0 0
  %271 = vmatpush2.bf16.msra.mxu0 0
  %272 = vmatprep.subr.bf16.mxu0 0
  %273 = vmatpush2.bf16.msra.mxu0 0
  %274 = vmatprep.subr.bf16.mxu0 0
  %275 = vmatpush2.bf16.msra.mxu0 0
  %276 = vmatprep.subr.bf16.mxu0 0
  %277 = vmatpush2.bf16.msra.mxu0 0
  %278 = vmatprep.subr.bf16.mxu0 0
  %279 = vmatpush2.bf16.msra.mxu0 0
  %280 = vmatprep.subr.bf16.mxu0 0
  %281 = vmatpush2.bf16.msra.mxu0 0
  %282 = vmatprep.subr.bf16.mxu0 0
  %283 = vmatpush2.bf16.msra.mxu0 0
  %284 = vmatprep.mubr.bf16.mxu0 0
  %285 = vmatmul.mubr.bf16.gmra.mxu0 %v187
  %v286 = vpop.f32.mrf.mxu0
  %v287 = vadd.f32 0.0, %v286
  %v288 = vpop.f32.mrf.mxu0
  %v289 = vpop.f32.mrf.mxu0
  %v290 = vadd.f32 0.0, %v289
  %v291 = vpop.f32.mrf.mxu0
  %292 = vdwg.mxu0
  %v293 = vadd.f32 %v185, %v287
  %v294 = vadd.f32 %v186, %v290
  %295 = vst.msk [vmem:[#allocation3] sm:$0xff] %vm122, %v293
  %296 = vst.msk [vmem:[#allocation3 + $0x8] sm:$0xff] %vm122, %v294
  // Predicated region
  $region34: #{decoder_forward.9} parent=0 // pred_check
    %p297 = pneg %p27
  $region35: #{decoder_forward.9} parent=0 // pred_check_branch
    %299 = sbr.rel (%p297) target = $region37
  $region36: #{decoder_forward.9} parent=0 // pred_region
    %v300 = vld [vmem:[#allocation3] sm:$0xff]
    %v301 = vld [vmem:[#allocation3 + $0x8] sm:$0xff]
    %v302 = vld [vmem:[%s6] sm:$0x1]
    %v304 = vlaneseq
    %v305 = vshrl.u32 %v304, 7
    %v306 = vsub.s32 0, %v305
    %v307 = vrot.slane %v302, %v306
    %v309 = vadd.f32 %v300, %v307
    %v310 = vadd.f32 %v301, %v307
    %v311 = vld [vmem:[%s0] sm:$0xff]
    %v312 = vld [vmem:[%s0 + $0x8] sm:$0xff]
    %v313 = vadd.f32 %v309, %v311
    %v314 = vadd.f32 %v310, %v312
    %315 = vst.msk [vmem:[%s7] sm:$0xff] %vm122, %v313
    %316 = vst.msk [vmem:[%s7 + $0x8] sm:$0xff] %vm122, %v314
  $region37: #{decoder_forward.9} parent=0 // pred_fallthru
    _
  // Predicated region
  $region38: #{decoder_forward.9} parent=0 // pred_check
    _
  $region39: #{decoder_forward.9} parent=0 // pred_check_branch
    %318 = sbr.rel (0) target = $region41
  $region40: #{decoder_forward.9} parent=0 // pred_region
    _
  $region41: #{decoder_forward.9} parent=0 // pred_fallthru
    _
  // Predicated region
  $region42: #{decoder_forward.9} parent=0 // pred_check
    _
  $region43: #{decoder_forward.9} parent=0 // pred_check_branch
    %320 = sbr.rel (0) target = $region45
  $region44: #{decoder_forward.9} parent=0 // pred_region
    _
  $region45: #{decoder_forward.9} parent=0 // pred_fallthru
    _

// kernel: decoder_forward.8
$region0: #{decoder_forward.8}
  #allocation0 [shape = 'u32[]', space=smem, size = 0x4, offset = 0x4, fixed_abs, tag = 'smem constant byte address 0x4 - core index']
  #allocation1 [shape = 'u32[144,128]{1,0:T(1,128)}', space=vmem, size = 0x12000, scoped, tag = 'internal scratch']
  %s0 = inlined_call_operand.vmem [shape: f32[2,8,32], index: 0, kind: input, shape index: {}]
  %s1 = inlined_call_operand.vmem [shape: f32[2,8,32], index: 1, kind: input, shape index: {}]
  %s2 = inlined_call_operand.vmem [shape: f32[2,8,32], index: 2, kind: input, shape index: {}]
  %s3 = inlined_call_operand.vmem [shape: s32[2,1,8], index: 3, kind: input, shape index: {}]
  %s4 = inlined_call_operand.vmem [shape: f32[2,8,32], index: 4, kind: input, shape index: {}]
  %s5 = inlined_call_operand.vmem [shape: bf16[32,32], index: 5, kind: input, shape index: {}]
  %s6 = inlined_call_operand.vmem [shape: f32[1,32], index: 6, kind: input, shape index: {}]
  %s7 = inlined_call_operand.vmem [shape: f32[1,32], index: 7, kind: input, shape index: {}]
  %s8 = inlined_call_operand.vmem [shape: f32[1,32], index: 8, kind: input, shape index: {}]
  %s9 = inlined_call_operand.vmem [shape: f32[2,8,32], index: 9, kind: output, shape index: {}]
  %s10 = sld [smem:[#allocation0]]
  $region69: #{decoder_forward.8} parent=0
    _
  %s12 = ssub.s32 1, %s10
  %s13 = scalar_select 0, %s12, %s10
  loop: start=0, step=1, limit=4
  $region2: #{decoder_forward.8} parent=0 // loop_pre_header
    _
  $region3: #{decoder_forward.8} parent=0 // loop_header
    %s15 = sphi 0, %s19
    %p16 = scmp.ge.s32.totalorder %s15, 4
    %s25 = sphi 0, %s27
    %s28 = sphi 0, %s25
    %s29 = sphi 0, %s28
    %s45 = sphi 0, %s29
    %s51 = sphi 0, %s53
    %s54 = sphi 0, %s51
    %s55 = sphi 0, %s54
    %s71 = sphi 0, %s55
    %s77 = sphi 0, %s79
    %s80 = sphi 0, %s77
    %s81 = sphi 0, %s80
    %s97 = sphi 0, %s81
    %s103 = sphi 0, %s105
    %s106 = sphi 0, %s103
    %s107 = sphi 0, %s106
    %s123 = sphi 0, %s107
    %s129 = sphi 0, %s131
    %s132 = sphi 0, %s129
    %s133 = sphi 0, %s132
    %s149 = sphi 0, %s133
    %s153 = sphi 0, %s153
    %s155 = sphi 0, %s153
    %s156 = sphi 0, %s155
    %s170 = sphi 0, %s156
    %s174 = sphi 0, %s174
    %s176 = sphi 0, %s174
    %s177 = sphi 0, %s176
    %s191 = sphi 0, %s177
    %s195 = sphi 0, %s195
    %s197 = sphi 0, %s195
    %s198 = sphi 0, %s197
    %s212 = sphi 0, %s198
    %s216 = sphi 0, %s216
    %s218 = sphi 0, %s216
    %s219 = sphi 0, %s218
    %s233 = sphi 0, %s219
    %s239 = sphi 0, %s241
    %s242 = sphi 0, %s239
    %s243 = sphi 0, %s242
    %s259 = sphi 0, %s243
  $region4: #{decoder_forward.8} parent=0 // loop_header_branch
    %18 = sbr.rel (%p16) target = $region8
  $region5: #{decoder_forward.8} parent=0 // loop_body
    %s20 = ssub.s32 %s15, 1
    %s21 = ssub.s32 %s15, 2
    %s22 = sadd.s32 %s15, 1
    %s23 = ssub.s32 %s15, %s22
    %p24 = scmp.eq.s32.totalorder %s23, 0
    %s26 = sadd.s32 %s25, 1
    %s27 = scalar_select %p24, %s25, %s26
    %p30 = pneg %p24
    %p31 = scmp.eq.s32.totalorder %s15, 1
    %p32 = por %p30, %p31
    %p33 = scmp.ne.s32.totalorder %s25, %s28
    %p34 = scmp.eq.s32.totalorder %s15, 0
    %p35 = por %p33, %p34
    %p36 = scmp.ne.s32.totalorder %s25, %s28
    %p37 = scmp.eq.s32.totalorder %s20, 1
    %p38 = por %p36, %p37
    %p39 = scmp.ne.s32.totalorder %s28, %s29
    %p40 = scmp.eq.s32.totalorder %s20, 0
    %p41 = por %p39, %p40
    %p42 = scmp.ne.s32.totalorder %s28, %s29
    %p43 = scmp.eq.s32.totalorder %s21, 1
    %p44 = por %p42, %p43
    %p46 = scmp.ne.s32.totalorder %s29, %s45
    %p47 = scmp.eq.s32.totalorder %s21, 0
    %p48 = por %p46, %p47
    %s49 = ssub.s32 %s15, %s22
    %p50 = scmp.eq.s32.totalorder %s49, 0
    %s52 = sadd.s32 %s51, 1
    %s53 = scalar_select %p50, %s51, %s52
    %p56 = pneg %p50
    %p57 = scmp.eq.s32.totalorder %s15, 1
    %p58 = por %p56, %p57
    %p59 = scmp.ne.s32.totalorder %s51, %s54
    %p60 = scmp.eq.s32.totalorder %s15, 0
    %p61 = por %p59, %p60
    %p62 = scmp.ne.s32.totalorder %s51, %s54
    %p63 = scmp.eq.s32.totalorder %s20, 1
    %p64 = por %p62, %p63
    %p65 = scmp.ne.s32.totalorder %s54, %s55
    %p66 = scmp.eq.s32.totalorder %s20, 0
    %p67 = por %p65, %p66
    %p68 = scmp.ne.s32.totalorder %s54, %s55
    %p69 = scmp.eq.s32.totalorder %s21, 1
    %p70 = por %p68, %p69
    %p72 = scmp.ne.s32.totalorder %s55, %s71
    %p73 = scmp.eq.s32.totalorder %s21, 0
    %p74 = por %p72, %p73
    %s75 = ssub.s32 %s15, %s22
    %p76 = scmp.eq.s32.totalorder %s75, 0
    %s78 = sadd.s32 %s77, 1
    %s79 = scalar_select %p76, %s77, %s78
    %p82 = pneg %p76
    %p83 = scmp.eq.s32.totalorder %s15, 1
    %p84 = por %p82, %p83
    %p85 = scmp.ne.s32.totalorder %s77, %s80
    %p86 = scmp.eq.s32.totalorder %s15, 0
    %p87 = por %p85, %p86
    %p88 = scmp.ne.s32.totalorder %s77, %s80
    %p89 = scmp.eq.s32.totalorder %s20, 1
    %p90 = por %p88, %p89
    %p91 = scmp.ne.s32.totalorder %s80, %s81
    %p92 = scmp.eq.s32.totalorder %s20, 0
    %p93 = por %p91, %p92
    %p94 = scmp.ne.s32.totalorder %s80, %s81
    %p95 = scmp.eq.s32.totalorder %s21, 1
    %p96 = por %p94, %p95
    %p98 = scmp.ne.s32.totalorder %s81, %s97
    %p99 = scmp.eq.s32.totalorder %s21, 0
    %p100 = por %p98, %p99
    %s101 = ssub.s32 %s15, %s22
    %p102 = scmp.eq.s32.totalorder %s101, 0
    %s104 = sadd.s32 %s103, 1
    %s105 = scalar_select %p102, %s103, %s104
    %p108 = pneg %p102
    %p109 = scmp.eq.s32.totalorder %s15, 1
    %p110 = por %p108, %p109
    %p111 = scmp.ne.s32.totalorder %s103, %s106
    %p112 = scmp.eq.s32.totalorder %s15, 0
    %p113 = por %p111, %p112
    %p114 = scmp.ne.s32.totalorder %s103, %s106
    %p115 = scmp.eq.s32.totalorder %s20, 1
    %p116 = por %p114, %p115
    %p117 = scmp.ne.s32.totalorder %s106, %s107
    %p118 = scmp.eq.s32.totalorder %s20, 0
    %p119 = por %p117, %p118
    %p120 = scmp.ne.s32.totalorder %s106, %s107
    %p121 = scmp.eq.s32.totalorder %s21, 1
    %p122 = por %p120, %p121
    %p124 = scmp.ne.s32.totalorder %s107, %s123
    %p125 = scmp.eq.s32.totalorder %s21, 0
    %p126 = por %p124, %p125
    %s127 = ssub.s32 %s15, %s22
    %p128 = scmp.eq.s32.totalorder %s127, 0
    %s130 = sadd.s32 %s129, 1
    %s131 = scalar_select %p128, %s129, %s130
    %p134 = pneg %p128
    %p135 = scmp.eq.s32.totalorder %s15, 1
    %p136 = por %p134, %p135
    %p137 = scmp.ne.s32.totalorder %s129, %s132
    %p138 = scmp.eq.s32.totalorder %s15, 0
    %p139 = por %p137, %p138
    %p140 = scmp.ne.s32.totalorder %s129, %s132
    %p141 = scmp.eq.s32.totalorder %s20, 1
    %p142 = por %p140, %p141
    %p143 = scmp.ne.s32.totalorder %s132, %s133
    %p144 = scmp.eq.s32.totalorder %s20, 0
    %p145 = por %p143, %p144
    %p146 = scmp.ne.s32.totalorder %s132, %s133
    %p147 = scmp.eq.s32.totalorder %s21, 1
    %p148 = por %p146, %p147
    %p150 = scmp.ne.s32.totalorder %s133, %s149
    %p151 = scmp.eq.s32.totalorder %s21, 0
    %p152 = por %p150, %p151
    %s154 = sadd.s32 %s153, 1
    %p157 = scmp.eq.s32.totalorder %s15, 1
    %p158 = scmp.ne.s32.totalorder %s153, %s155
    %p159 = scmp.eq.s32.totalorder %s15, 0
    %p160 = por %p158, %p159
    %p161 = scmp.ne.s32.totalorder %s153, %s155
    %p162 = scmp.eq.s32.totalorder %s20, 1
    %p163 = por %p161, %p162
    %p164 = scmp.ne.s32.totalorder %s155, %s156
    %p165 = scmp.eq.s32.totalorder %s20, 0
    %p166 = por %p164, %p165
    %p167 = scmp.ne.s32.totalorder %s155, %s156
    %p168 = scmp.eq.s32.totalorder %s21, 1
    %p169 = por %p167, %p168
    %p171 = scmp.ne.s32.totalorder %s156, %s170
    %p172 = scmp.eq.s32.totalorder %s21, 0
    %p173 = por %p171, %p172
    %s175 = sadd.s32 %s174, 1
    %p178 = scmp.eq.s32.totalorder %s15, 1
    %p179 = scmp.ne.s32.totalorder %s174, %s176
    %p180 = scmp.eq.s32.totalorder %s15, 0
    %p181 = por %p179, %p180
    %p182 = scmp.ne.s32.totalorder %s174, %s176
    %p183 = scmp.eq.s32.totalorder %s20, 1
    %p184 = por %p182, %p183
    %p185 = scmp.ne.s32.totalorder %s176, %s177
    %p186 = scmp.eq.s32.totalorder %s20, 0
    %p187 = por %p185, %p186
    %p188 = scmp.ne.s32.totalorder %s176, %s177
    %p189 = scmp.eq.s32.totalorder %s21, 1
    %p190 = por %p188, %p189
    %p192 = scmp.ne.s32.totalorder %s177, %s191
    %p193 = scmp.eq.s32.totalorder %s21, 0
    %p194 = por %p192, %p193
    %s196 = sadd.s32 %s195, 1
    %p199 = scmp.eq.s32.totalorder %s15, 1
    %p200 = scmp.ne.s32.totalorder %s195, %s197
    %p201 = scmp.eq.s32.totalorder %s15, 0
    %p202 = por %p200, %p201
    %p203 = scmp.ne.s32.totalorder %s195, %s197
    %p204 = scmp.eq.s32.totalorder %s20, 1
    %p205 = por %p203, %p204
    %p206 = scmp.ne.s32.totalorder %s197, %s198
    %p207 = scmp.eq.s32.totalorder %s20, 0
    %p208 = por %p206, %p207
    %p209 = scmp.ne.s32.totalorder %s197, %s198
    %p210 = scmp.eq.s32.totalorder %s21, 1
    %p211 = por %p209, %p210
    %p213 = scmp.ne.s32.totalorder %s198, %s212
    %p214 = scmp.eq.s32.totalorder %s21, 0
    %p215 = por %p213, %p214
    %s217 = sadd.s32 %s216, 1
    %p220 = scmp.eq.s32.totalorder %s15, 1
    %p221 = scmp.ne.s32.totalorder %s216, %s218
    %p222 = scmp.eq.s32.totalorder %s15, 0
    %p223 = por %p221, %p222
    %p224 = scmp.ne.s32.totalorder %s216, %s218
    %p225 = scmp.eq.s32.totalorder %s20, 1
    %p226 = por %p224, %p225
    %p227 = scmp.ne.s32.totalorder %s218, %s219
    %p228 = scmp.eq.s32.totalorder %s20, 0
    %p229 = por %p227, %p228
    %p230 = scmp.ne.s32.totalorder %s218, %s219
    %p231 = scmp.eq.s32.totalorder %s21, 1
    %p232 = por %p230, %p231
    %p234 = scmp.ne.s32.totalorder %s219, %s233
    %p235 = scmp.eq.s32.totalorder %s21, 0
    %p236 = por %p234, %p235
    %s237 = ssub.s32 %s15, %s22
    %p238 = scmp.eq.s32.totalorder %s237, 0
    %s240 = sadd.s32 %s239, 1
    %s241 = scalar_select %p238, %s239, %s240
    %p244 = pneg %p238
    %p245 = scmp.eq.s32.totalorder %s15, 1
    %p246 = por %p244, %p245
    %p247 = scmp.ne.s32.totalorder %s239, %s242
    %p248 = scmp.eq.s32.totalorder %s15, 0
    %p249 = por %p247, %p248
    %p250 = scmp.ne.s32.totalorder %s239, %s242
    %p251 = scmp.eq.s32.totalorder %s20, 1
    %p252 = por %p250, %p251
    %p253 = scmp.ne.s32.totalorder %s242, %s243
    %p254 = scmp.eq.s32.totalorder %s20, 0
    %p255 = por %p253, %p254
    %p256 = scmp.ne.s32.totalorder %s242, %s243
    %p257 = scmp.eq.s32.totalorder %s21, 1
    %p258 = por %p256, %p257
    %p260 = scmp.ne.s32.totalorder %s243, %s259
    %p261 = scmp.eq.s32.totalorder %s21, 0
    %p262 = por %p260, %p261
    %p263 = scmp.le.s32.totalorder 1, %s15
    %p264 = scmp.lt.s32.totalorder %s15, 3
    %p265 = pnand %p263, %p264
    %p266 = pneg %p265
    // Predicated region
    $region9: #{decoder_forward.8} parent=5 // pred_check
      _
    $region10: #{decoder_forward.8} parent=5 // pred_check_branch
      %268 = sbr.rel (%p265) target = $region12
    $region11: #{decoder_forward.8} parent=5 // pred_region
      %s269 = ssub.s32 %s15, 1
      // Predicated region
      $region13: #{decoder_forward.8} parent=11 // pred_check
        %p270 = pneg %p166
      $region14: #{decoder_forward.8} parent=11 // pred_check_branch
        %272 = sbr.rel (%p270) target = $region16
      $region15: #{decoder_forward.8} parent=11 // pred_region
        _
      $region16: #{decoder_forward.8} parent=11 // pred_fallthru
        _
      // Predicated region
      $region17: #{decoder_forward.8} parent=11 // pred_check
        %p273 = pneg %p187
      $region18: #{decoder_forward.8} parent=11 // pred_check_branch
        %275 = sbr.rel (%p273) target = $region20
      $region19: #{decoder_forward.8} parent=11 // pred_region
        _
      $region20: #{decoder_forward.8} parent=11 // pred_fallthru
        _
      // Predicated region
      $region21: #{decoder_forward.8} parent=11 // pred_check
        %p276 = pneg %p208
      $region22: #{decoder_forward.8} parent=11 // pred_check_branch
        %278 = sbr.rel (%p276) target = $region24
      $region23: #{decoder_forward.8} parent=11 // pred_region
        _
      $region24: #{decoder_forward.8} parent=11 // pred_fallthru
        _
      // Predicated region
      $region25: #{decoder_forward.8} parent=11 // pred_check
        %p279 = pneg %p229
      $region26: #{decoder_forward.8} parent=11 // pred_check_branch
        %281 = sbr.rel (%p279) target = $region28
      $region27: #{decoder_forward.8} parent=11 // pred_region
        _
      $region28: #{decoder_forward.8} parent=11 // pred_fallthru
        _
    $region12: #{decoder_forward.8} parent=5 // pred_fallthru
      _
    %p282 = scmp.lt.s32.totalorder %s15, 2
    // Predicated region
    $region29: #{decoder_forward.8} parent=5 // pred_check
      %p283 = pneg %p282
    $region30: #{decoder_forward.8} parent=5 // pred_check_branch
      %285 = sbr.rel (%p283) target = $region32
    $region31: #{decoder_forward.8} parent=5 // pred_region
      // Predicated region
      $region33: #{decoder_forward.8} parent=31 // pred_check
        %p286 = pneg %p35
      $region34: #{decoder_forward.8} parent=31 // pred_check_branch
        %288 = sbr.rel (%p286) target = $region36
      $region35: #{decoder_forward.8} parent=31 // pred_region
        %p289 = scmp.lt.s32.totalorder %s15, 1
        %s290 = scalar_select %p289, %s15, 1
        %s291 = smul.addr %s290, 8
        %s292 = scalar_lea.vmem %s0, %s291
      $region36: #{decoder_forward.8} parent=31 // pred_fallthru
        _
      // Predicated region
      $region37: #{decoder_forward.8} parent=31 // pred_check
        %p293 = pneg %p61
      $region38: #{decoder_forward.8} parent=31 // pred_check_branch
        %295 = sbr.rel (%p293) target = $region40
      $region39: #{decoder_forward.8} parent=31 // pred_region
        %p296 = scmp.lt.s32.totalorder %s15, 1
        %s297 = scalar_select %p296, %s15, 1
        %s298 = smul.addr %s297, 8
        %s299 = scalar_lea.vmem %s1, %s298
      $region40: #{decoder_forward.8} parent=31 // pred_fallthru
        _
      // Predicated region
      $region41: #{decoder_forward.8} parent=31 // pred_check
        %p300 = pneg %p87
      $region42: #{decoder_forward.8} parent=31 // pred_check_branch
        %302 = sbr.rel (%p300) target = $region44
      $region43: #{decoder_forward.8} parent=31 // pred_region
        %p303 = scmp.lt.s32.totalorder %s15, 1
        %s304 = scalar_select %p303, %s15, 1
        %s305 = smul.addr %s304, 8
        %s306 = scalar_lea.vmem %s2, %s305
      $region44: #{decoder_forward.8} parent=31 // pred_fallthru
        _
      // Predicated region
      $region45: #{decoder_forward.8} parent=31 // pred_check
        %p307 = pneg %p113
      $region46: #{decoder_forward.8} parent=31 // pred_check_branch
        %309 = sbr.rel (%p307) target = $region48
      $region47: #{decoder_forward.8} parent=31 // pred_region
        %p310 = scmp.lt.s32.totalorder %s15, 1
        %s311 = scalar_select %p310, %s15, 1
        %s312 = scalar_lea.vmem %s3, %s311
      $region48: #{decoder_forward.8} parent=31 // pred_fallthru
        _
      // Predicated region
      $region49: #{decoder_forward.8} parent=31 // pred_check
        %p313 = pneg %p139
      $region50: #{decoder_forward.8} parent=31 // pred_check_branch
        %315 = sbr.rel (%p313) target = $region52
      $region51: #{decoder_forward.8} parent=31 // pred_region
        %p316 = scmp.lt.s32.totalorder %s15, 1
        %s317 = scalar_select %p316, %s15, 1
        %s318 = smul.addr %s317, 8
        %s319 = scalar_lea.vmem %s4, %s318
      $region52: #{decoder_forward.8} parent=31 // pred_fallthru
        _
    $region32: #{decoder_forward.8} parent=5 // pred_fallthru
      _
    %p320 = scmp.le.s32.totalorder 1, %s15
    %p321 = scmp.lt.s32.totalorder %s15, 3
    %p322 = pnand %p320, %p321
    %p323 = pneg %p322
    // Predicated region
    $region53: #{decoder_forward.8} parent=5 // pred_check
      _
    $region54: #{decoder_forward.8} parent=5 // pred_check_branch
      %325 = sbr.rel (%p322) target = $region56
    $region55: #{decoder_forward.8} parent=5 // pred_region
      %s326 = ssub.s32 %s15, 1
      %p327 = scmp.lt.s32.totalorder %s20, 1
      %s328 = scalar_select %p327, %s20, 1
      %s329 = smul.addr %s328, 8
      %s330 = scalar_lea.vmem %s0, %s329
      %p331 = pneg %p41
      %p332 = pneg %p38
      %p333 = scmp.lt.s32.totalorder %s20, 1
      %s334 = scalar_select %p333, %s20, 1
      %s335 = smul.addr %s334, 8
      %s336 = scalar_lea.vmem %s1, %s335
      %p337 = pneg %p67
      %p338 = pneg %p64
      %p339 = scmp.lt.s32.totalorder %s20, 1
      %s340 = scalar_select %p339, %s20, 1
      %s341 = smul.addr %s340, 8
      %s342 = scalar_lea.vmem %s2, %s341
      %p343 = pneg %p93
      %p344 = pneg %p90
      %p345 = scmp.lt.s32.totalorder %s20, 1
      %s346 = scalar_select %p345, %s20, 1
      %s347 = scalar_lea.vmem %s3, %s346
      %p348 = pneg %p119
      %p349 = pneg %p116
      %p350 = scmp.lt.s32.totalorder %s20, 1
      %s351 = scalar_select %p350, %s20, 1
      %s352 = smul.addr %s351, 8
      %s353 = scalar_lea.vmem %s4, %s352
      %p354 = pneg %p145
      %p355 = pneg %p142
      %p356 = pneg %p166
      %p357 = pneg %p163
      %p358 = pneg %p187
      %p359 = pneg %p184
      %p360 = pneg %p208
      %p361 = pneg %p205
      %p362 = pneg %p229
      %p363 = pneg %p226
      %p364 = pneg %p255
      %p365 = pneg %p252
      %p366 = scmp.lt.s32.totalorder %s20, 1
      %s367 = scalar_select %p366, %s20, 1
      %s368 = smul.addr %s367, 8
      %s369 = scalar_lea.vmem %s9, %s368
      %p370 = scmp.lt.s32.totalorder %s20, 1
      %s371 = scalar_select %p370, %s20, 1
      %s372 = smul.addr %s371, 8
      %s373 = scalar_lea.vmem %s0, %s372
      %p374 = scmp.lt.s32.totalorder %s20, 1
      %s375 = scalar_select %p374, %s20, 1
      %s376 = smul.addr %s375, 8
      %s377 = scalar_lea.vmem %s1, %s376
      %p378 = scmp.lt.s32.totalorder %s20, 1
      %s379 = scalar_select %p378, %s20, 1
      %s380 = smul.addr %s379, 8
      %s381 = scalar_lea.vmem %s2, %s380
      %p382 = scmp.lt.s32.totalorder %s20, 1
      %s383 = scalar_select %p382, %s20, 1
      %s384 = scalar_lea.vmem %s3, %s383
      %p385 = scmp.lt.s32.totalorder %s20, 1
      %s386 = scalar_select %p385, %s20, 1
      %s387 = smul.addr %s386, 8
      %s388 = scalar_lea.vmem %s4, %s387
      %p389 = scmp.lt.s32.totalorder %s20, 1
      %s390 = scalar_select %p389, %s20, 1
      %s391 = smul.addr %s390, 8
      %s392 = scalar_lea.vmem %s9, %s391
      %v394 = vld [vmem:[%s373] sm:$0xff]
      %v395 = vpack.c.bf16 %v394, %v394
      %v396 = vld [vmem:[%s377] sm:$0xff]
      %v397 = vpack.c.bf16 %v396, %v396
      %v398 = vld [vmem:[%s381] sm:$0xff]
      %v399 = vpack.c.bf16 %v398, %v398
      %v400 = vld [vmem:[%s384] sm:$0x1]
      %v401 = vlaneseq
      %v402 = vand.u32 %v401, 127
      %v403 = vlaneseq
      %v404 = vshrl.u32 %v403, 7
      %vm405 = vcmp.ne.s32.totalorder %v400, 0
      %vm406 = vcmp.le.s32.totalorder %v402, %v404
      %v407 = vsel %vm405, 1, 0
      %v408 = vlaneseq
      %v409 = vshrl.u32 %v408, 7
      %v410 = vsub.s32 0, %v409
      %v411 = vrot.slane %v407, %v410
      %vm412 = vcmp.eq.s32.totalorder %v411, 1
      %vm413 = vmand %vm412, %vm406
      %vm414 = vcmask 64512
      %v416 = vsel %vm414, %v395, 0
      %v419 = vsel %vm414, %v397, 0
      %421 = vmatprep.subr.bf16.mxu0 0
      %422 = vmatpush1.bf16.xpose.msra.mxu0 0
      %423 = vmatprep.subr.bf16.mxu0 0
      %424 = vmatpush1.bf16.xpose.msra.mxu0 0
      %425 = vmatprep.subr.bf16.mxu0 0
      %426 = vmatpush1.bf16.xpose.msra.mxu0 0
      %427 = vmatprep.subr.bf16.mxu0 0
      %428 = vmatpush1.bf16.xpose.msra.mxu0 0
      %429 = vmatprep.subr.bf16.mxu0 0
      %430 = vmatpush1.bf16.xpose.msra.mxu0 0
      %431 = vmatprep.subr.bf16.mxu0 0
      %432 = vmatpush1.bf16.xpose.msra.mxu0 0
      %433 = vmatprep.subr.bf16.mxu0 0
      %434 = vmatpush1.bf16.xpose.msra.mxu0 0
      %435 = vmatprep.subr.bf16.mxu0 0
      %436 = vmatpush1.bf16.xpose.msra.mxu0 %v419
      %437 = vmatprep.subr.bf16.mxu0 0
      %438 = vmatpush2.bf16.xpose.msra.mxu0 0
      %439 = vmatprep.subr.bf16.mxu0 0
      %440 = vmatpush2.bf16.xpose.msra.mxu0 0
      %441 = vmatprep.subr.bf16.mxu0 0
      %442 = vmatpush2.bf16.xpose.msra.mxu0 0
      %443 = vmatprep.subr.bf16.mxu0 0
      %444 = vmatpush2.bf16.xpose.msra.mxu0 0
      %445 = vmatprep.subr.bf16.mxu0 0
      %446 = vmatpush2.bf16.xpose.msra.mxu0 0
      %447 = vmatprep.subr.bf16.mxu0 0
      %448 = vmatpush2.bf16.xpose.msra.mxu0 0
      %449 = vmatprep.subr.bf16.mxu0 0
      %450 = vmatpush2.bf16.xpose.msra.mxu0 0
      %451 = vmatprep.subr.bf16.mxu0 0
      %452 = vmatpush2.bf16.xpose.msra.mxu0 0
      %453 = vmatprep.mubr.bf16.mxu0 0
      %454 = vmatmul.mubr.bf16.gmra.mxu0 %v416
      %v455 = vpop.f32.mrf.mxu0
      %v456 = vadd.f32 0.0, %v455
      %v457 = vpop.f32.mrf.mxu0
      %v458 = vpop.f32.mrf.mxu0
      %v459 = vpop.f32.mrf.mxu0
      %460 = vdwg.mxu0
      %v461 = vmul.f32 %v456, 0.35355338
      %v462 = vsel %vm413, -1e+30, %v461
      %v463 = vsel %vm414, %v462, -inf
      %464 = vmax.xlane.f32.xlu0 %v463
      %v465 = vpop.xlane.xlu0 %464
      %v466 = vsub.f32 %v462, %v465
      %v467 = vmul.f32 %v466, 1.442695
      %v468 = vpow.pop %v467
      %v469 = vsel %vm413, 0.0, %v468
      %v470 = vsel %vm414, %v469, 0.0
      %471 = vadd.xlane.f32.xlu0 %v470
      %v472 = vpop.xlane.xlu0 %471
      %vm473 = vcmp.gt.f32.partialorder %v472, 0.0
      %v474 = vsel %vm473, %v472, 1.0
      %v475 = vrcp.pop %v474
      %v476 = vmul.f32 %v469, %v475
      %v477 = vpack.c.bf16 %v476, %v476
      %v479 = vsel %vm414, %v477, 0
      %vm481 = vcmask 1043456
      %v483 = vsel %vm481, %v399, 0
      %485 = vmatprep.subr.bf16.mxu0 0
      %486 = vmatpush1.bf16.msra.mxu0 0
      %487 = vmatprep.subr.bf16.mxu0 0
      %488 = vmatpush1.bf16.msra.mxu0 0
      %489 = vmatprep.subr.bf16.mxu0 0
      %490 = vmatpush1.bf16.msra.mxu0 0
      %491 = vmatprep.subr.bf16.mxu0 0
      %492 = vmatpush1.bf16.msra.mxu0 0
      %493 = vmatprep.subr.bf16.mxu0 0
      %494 = vmatpush1.bf16.msra.mxu0 0
      %495 = vmatprep.subr.bf16.mxu0 0
      %496 = vmatpush1.bf16.msra.mxu0 0
      %497 = vmatprep.subr.bf16.mxu0 0
      %498 = vmatpush1.bf16.msra.mxu0 0
      %499 = vmatprep.subr.bf16.mxu0 0
      %500 = vmatpush1.bf16.msra.mxu0 %v483
      %501 = vmatprep.subr.bf16.mxu0 0
      %502 = vmatpush2.bf16.msra.mxu0 0
      %503 = vmatprep.subr.bf16.mxu0 0
      %504 = vmatpush2.bf16.msra.mxu0 0
      %505 = vmatprep.subr.bf16.mxu0 0
      %506 = vmatpush2.bf16.msra.mxu0 0
      %507 = vmatprep.subr.bf16.mxu0 0
      %508 = vmatpush2.bf16.msra.mxu0 0
      %509 = vmatprep.subr.bf16.mxu0 0
      %510 = vmatpush2.bf16.msra.mxu0 0
      %511 = vmatprep.subr.bf16.mxu0 0
      %512 = vmatpush2.bf16.msra.mxu0 0
      %513 = vmatprep.subr.bf16.mxu0 0
      %514 = vmatpush2.bf16.msra.mxu0 0
      %515 = vmatprep.subr.bf16.mxu0 0
      %516 = vmatpush2.bf16.msra.mxu0 0
      %517 = vmatprep.mubr.bf16.mxu0 0
      %518 = vmatmul.mubr.bf16.gmra.mxu0 %v479
      %v519 = vpop.f32.mrf.mxu0
      %v520 = vadd.f32 0.0, %v519
      %v521 = vpop.f32.mrf.mxu0
      %v522 = vpop.f32.mrf.mxu0
      %v523 = vpop.f32.mrf.mxu0
      %524 = vdwg.mxu0
      %526 = vrot.lane.b32.xlu0 %v395, 120
      %v527 = vpop.permute.xlu0 %526
      %529 = vrot.lane.b32.xlu0 %v397, 120
      %v530 = vpop.permute.xlu0 %529
      %v532 = vsel %vm414, %v527, 0
      %v535 = vsel %vm414, %v530, 0
      %537 = vmatprep.subr.bf16.mxu0 0
      %538 = vmatpush1.bf16.xpose.msra.mxu0 0
      %539 = vmatprep.subr.bf16.mxu0 0
      %540 = vmatpush1.bf16.xpose.msra.mxu0 0
      %541 = vmatprep.subr.bf16.mxu0 0
      %542 = vmatpush1.bf16.xpose.msra.mxu0 0
      %543 = vmatprep.subr.bf16.mxu0 0
      %544 = vmatpush1.bf16.xpose.msra.mxu0 0
      %545 = vmatprep.subr.bf16.mxu0 0
      %546 = vmatpush1.bf16.xpose.msra.mxu0 0
      %547 = vmatprep.subr.bf16.mxu0 0
      %548 = vmatpush1.bf16.xpose.msra.mxu0 0
      %549 = vmatprep.subr.bf16.mxu0 0
      %550 = vmatpush1.bf16.xpose.msra.mxu0 0
      %551 = vmatprep.subr.bf16.mxu0 0
      %552 = vmatpush1.bf16.xpose.msra.mxu0 %v535
      %553 = vmatprep.subr.bf16.mxu0 0
      %554 = vmatpush2.bf16.xpose.msra.mxu0 0
      %555 = vmatprep.subr.bf16.mxu0 0
      %556 = vmatpush2.bf16.xpose.msra.mxu0 0
      %557 = vmatprep.subr.bf16.mxu0 0
      %558 = vmatpush2.bf16.xpose.msra.mxu0 0
      %559 = vmatprep.subr.bf16.mxu0 0
      %560 = vmatpush2.bf16.xpose.msra.mxu0 0
      %561 = vmatprep.subr.bf16.mxu0 0
      %562 = vmatpush2.bf16.xpose.msra.mxu0 0
      %563 = vmatprep.subr.bf16.mxu0 0
      %564 = vmatpush2.bf16.xpose.msra.mxu0 0
      %565 = vmatprep.subr.bf16.mxu0 0
      %566 = vmatpush2.bf16.xpose.msra.mxu0 0
      %567 = vmatprep.subr.bf16.mxu0 0
      %568 = vmatpush2.bf16.xpose.msra.mxu0 0
      %569 = vmatprep.mubr.bf16.mxu0 0
      %570 = vmatmul.mubr.bf16.gmra.mxu0 %v532
      %v571 = vpop.f32.mrf.mxu0
      %v572 = vadd.f32 0.0, %v571
      %v573 = vpop.f32.mrf.mxu0
      %v574 = vpop.f32.mrf.mxu0
      %v575 = vpop.f32.mrf.mxu0
      %576 = vdwg.mxu0
      %v577 = vmul.f32 %v572, 0.35355338
      %v578 = vsel %vm413, -1e+30, %v577
      %v579 = vsel %vm414, %v578, -inf
      %580 = vmax.xlane.f32.xlu0 %v579
      %v581 = vpop.xlane.xlu0 %580
      %v582 = vsub.f32 %v578, %v581
      %v583 = vmul.f32 %v582, 1.442695
      %v584 = vpow.pop %v583
      %v585 = vsel %vm413, 0.0, %v584
      %v586 = vsel %vm414, %v585, 0.0
      %587 = vadd.xlane.f32.xlu0 %v586
      %v588 = vpop.xlane.xlu0 %587
      %vm589 = vcmp.gt.f32.partialorder %v588, 0.0
      %v590 = vsel %vm589, %v588, 1.0
      %v591 = vrcp.pop %v590
      %v592 = vmul.f32 %v585, %v591
      %v593 = vpack.c.bf16 %v592, %v592
      %595 = vrot.lane.b32.xlu0 %v399, 120
      %v596 = vpop.permute.xlu0 %595
      %v598 = vsel %vm414, %v593, 0
      %v601 = vsel %vm481, %v596, 0
      %603 = vmatprep.subr.bf16.mxu0 0
      %604 = vmatpush1.bf16.msra.mxu0 0
      %605 = vmatprep.subr.bf16.mxu0 0
      %606 = vmatpush1.bf16.msra.mxu0 0
      %607 = vmatprep.subr.bf16.mxu0 0
      %608 = vmatpush1.bf16.msra.mxu0 0
      %609 = vmatprep.subr.bf16.mxu0 0
      %610 = vmatpush1.bf16.msra.mxu0 0
      %611 = vmatprep.subr.bf16.mxu0 0
      %612 = vmatpush1.bf16.msra.mxu0 0
      %613 = vmatprep.subr.bf16.mxu0 0
      %614 = vmatpush1.bf16.msra.mxu0 0
      %615 = vmatprep.subr.bf16.mxu0 0
      %616 = vmatpush1.bf16.msra.mxu0 0
      %617 = vmatprep.subr.bf16.mxu0 0
      %618 = vmatpush1.bf16.msra.mxu0 %v601
      %619 = vmatprep.subr.bf16.mxu0 0
      %620 = vmatpush2.bf16.msra.mxu0 0
      %621 = vmatprep.subr.bf16.mxu0 0
      %622 = vmatpush2.bf16.msra.mxu0 0
      %623 = vmatprep.subr.bf16.mxu0 0
      %624 = vmatpush2.bf16.msra.mxu0 0
      %625 = vmatprep.subr.bf16.mxu0 0
      %626 = vmatpush2.bf16.msra.mxu0 0
      %627 = vmatprep.subr.bf16.mxu0 0
      %628 = vmatpush2.bf16.msra.mxu0 0
      %629 = vmatprep.subr.bf16.mxu0 0
      %630 = vmatpush2.bf16.msra.mxu0 0
      %631 = vmatprep.subr.bf16.mxu0 0
      %632 = vmatpush2.bf16.msra.mxu0 0
      %633 = vmatprep.subr.bf16.mxu0 0
      %634 = vmatpush2.bf16.msra.mxu0 0
      %635 = vmatprep.mubr.bf16.mxu0 0
      %636 = vmatmul.mubr.bf16.gmra.mxu0 %v598
      %v637 = vpop.f32.mrf.mxu0
      %v638 = vadd.f32 0.0, %v637
      %v639 = vpop.f32.mrf.mxu0
      %v640 = vpop.f32.mrf.mxu0
      %v641 = vpop.f32.mrf.mxu0
      %642 = vdwg.mxu0
      %643 = vrot.lane.b32.xlu0 %v395, 112
      %v644 = vpop.permute.xlu0 %643
      %645 = vrot.lane.b32.xlu0 %v397, 112
      %v646 = vpop.permute.xlu0 %645
      %v648 = vsel %vm414, %v644, 0
      %v651 = vsel %vm414, %v646, 0
      %653 = vmatprep.subr.bf16.mxu0 0
      %654 = vmatpush1.bf16.xpose.msra.mxu0 0
      %655 = vmatprep.subr.bf16.mxu0 0
      %656 = vmatpush1.bf16.xpose.msra.mxu0 0
      %657 = vmatprep.subr.bf16.mxu0 0
      %658 = vmatpush1.bf16.xpose.msra.mxu0 0
      %659 = vmatprep.subr.bf16.mxu0 0
      %660 = vmatpush1.bf16.xpose.msra.mxu0 0
      %661 = vmatprep.subr.bf16.mxu0 0
      %662 = vmatpush1.bf16.xpose.msra.mxu0 0
      %663 = vmatprep.subr.bf16.mxu0 0
      %664 = vmatpush1.bf16.xpose.msra.mxu0 0
      %665 = vmatprep.subr.bf16.mxu0 0
      %666 = vmatpush1.bf16.xpose.msra.mxu0 0
      %667 = vmatprep.subr.bf16.mxu0 0
      %668 = vmatpush1.bf16.xpose.msra.mxu0 %v651
      %669 = vmatprep.subr.bf16.mxu0 0
      %670 = vmatpush2.bf16.xpose.msra.mxu0 0
      %671 = vmatprep.subr.bf16.mxu0 0
      %672 = vmatpush2.bf16.xpose.msra.mxu0 0
      %673 = vmatprep.subr.bf16.mxu0 0
      %674 = vmatpush2.bf16.xpose.msra.mxu0 0
      %675 = vmatprep.subr.bf16.mxu0 0
      %676 = vmatpush2.bf16.xpose.msra.mxu0 0
      %677 = vmatprep.subr.bf16.mxu0 0
      %678 = vmatpush2.bf16.xpose.msra.mxu0 0
      %679 = vmatprep.subr.bf16.mxu0 0
      %680 = vmatpush2.bf16.xpose.msra.mxu0 0
      %681 = vmatprep.subr.bf16.mxu0 0
      %682 = vmatpush2.bf16.xpose.msra.mxu0 0
      %683 = vmatprep.subr.bf16.mxu0 0
      %684 = vmatpush2.bf16.xpose.msra.mxu0 0
      %685 = vmatprep.mubr.bf16.mxu0 0
      %686 = vmatmul.mubr.bf16.gmra.mxu0 %v648
      %v687 = vpop.f32.mrf.mxu0
      %v688 = vadd.f32 0.0, %v687
      %v689 = vpop.f32.mrf.mxu0
      %v690 = vpop.f32.mrf.mxu0
      %v691 = vpop.f32.mrf.mxu0
      %692 = vdwg.mxu0
      %v693 = vmul.f32 %v688, 0.35355338
      %v694 = vsel %vm413, -1e+30, %v693
      %v695 = vsel %vm414, %v694, -inf
      %696 = vmax.xlane.f32.xlu0 %v695
      %v697 = vpop.xlane.xlu0 %696
      %v698 = vsub.f32 %v694, %v697
      %v699 = vmul.f32 %v698, 1.442695
      %v700 = vpow.pop %v699
      %v701 = vsel %vm413, 0.0, %v700
      %v702 = vsel %vm414, %v701, 0.0
      %703 = vadd.xlane.f32.xlu0 %v702
      %v704 = vpop.xlane.xlu0 %703
      %vm705 = vcmp.gt.f32.partialorder %v704, 0.0
      %v706 = vsel %vm705, %v704, 1.0
      %v707 = vrcp.pop %v706
      %v708 = vmul.f32 %v701, %v707
      %v709 = vpack.c.bf16 %v708, %v708
      %710 = vrot.lane.b32.xlu0 %v399, 112
      %v711 = vpop.permute.xlu0 %710
      %v713 = vsel %vm414, %v709, 0
      %v716 = vsel %vm481, %v711, 0
      %718 = vmatprep.subr.bf16.mxu0 0
      %719 = vmatpush1.bf16.msra.mxu0 0
      %720 = vmatprep.subr.bf16.mxu0 0
      %721 = vmatpush1.bf16.msra.mxu0 0
      %722 = vmatprep.subr.bf16.mxu0 0
      %723 = vmatpush1.bf16.msra.mxu0 0
      %724 = vmatprep.subr.bf16.mxu0 0
      %725 = vmatpush1.bf16.msra.mxu0 0
      %726 = vmatprep.subr.bf16.mxu0 0
      %727 = vmatpush1.bf16.msra.mxu0 0
      %728 = vmatprep.subr.bf16.mxu0 0
      %729 = vmatpush1.bf16.msra.mxu0 0
      %730 = vmatprep.subr.bf16.mxu0 0
      %731 = vmatpush1.bf16.msra.mxu0 0
      %732 = vmatprep.subr.bf16.mxu0 0
      %733 = vmatpush1.bf16.msra.mxu0 %v716
      %734 = vmatprep.subr.bf16.mxu0 0
      %735 = vmatpush2.bf16.msra.mxu0 0
      %736 = vmatprep.subr.bf16.mxu0 0
      %737 = vmatpush2.bf16.msra.mxu0 0
      %738 = vmatprep.subr.bf16.mxu0 0
      %739 = vmatpush2.bf16.msra.mxu0 0
      %740 = vmatprep.subr.bf16.mxu0 0
      %741 = vmatpush2.bf16.msra.mxu0 0
      %742 = vmatprep.subr.bf16.mxu0 0
      %743 = vmatpush2.bf16.msra.mxu0 0
      %744 = vmatprep.subr.bf16.mxu0 0
      %745 = vmatpush2.bf16.msra.mxu0 0
      %746 = vmatprep.subr.bf16.mxu0 0
      %747 = vmatpush2.bf16.msra.mxu0 0
      %748 = vmatprep.subr.bf16.mxu0 0
      %749 = vmatpush2.bf16.msra.mxu0 0
      %750 = vmatprep.mubr.bf16.mxu0 0
      %751 = vmatmul.mubr.bf16.gmra.mxu0 %v713
      %v752 = vpop.f32.mrf.mxu0
      %v753 = vadd.f32 0.0, %v752
      %v754 = vpop.f32.mrf.mxu0
      %v755 = vpop.f32.mrf.mxu0
      %v756 = vpop.f32.mrf.mxu0
      %757 = vdwg.mxu0
      %758 = vrot.lane.b32.xlu0 %v395, 104
      %v759 = vpop.permute.xlu0 %758
      %760 = vrot.lane.b32.xlu0 %v397, 104
      %v761 = vpop.permute.xlu0 %760
      %v763 = vsel %vm414, %v759, 0
      %v766 = vsel %vm414, %v761, 0
      %768 = vmatprep.subr.bf16.mxu0 0
      %769 = vmatpush1.bf16.xpose.msra.mxu0 0
      %770 = vmatprep.subr.bf16.mxu0 0
      %771 = vmatpush1.bf16.xpose.msra.mxu0 0
      %772 = vmatprep.subr.bf16.mxu0 0
      %773 = vmatpush1.bf16.xpose.msra.mxu0 0
      %774 = vmatprep.subr.bf16.mxu0 0
      %775 = vmatpush1.bf16.xpose.msra.mxu0 0
      %776 = vmatprep.subr.bf16.mxu0 0
      %777 = vmatpush1.bf16.xpose.msra.mxu0 0
      %778 = vmatprep.subr.bf16.mxu0 0
      %779 = vmatpush1.bf16.xpose.msra.mxu0 0
      %780 = vmatprep.subr.bf16.mxu0 0
      %781 = vmatpush1.bf16.xpose.msra.mxu0 0
      %782 = vmatprep.subr.bf16.mxu0 0
      %783 = vmatpush1.bf16.xpose.msra.mxu0 %v766
      %784 = vmatprep.subr.bf16.mxu0 0
      %785 = vmatpush2.bf16.xpose.msra.mxu0 0
      %786 = vmatprep.subr.bf16.mxu0 0
      %787 = vmatpush2.bf16.xpose.msra.mxu0 0
      %788 = vmatprep.subr.bf16.mxu0 0
      %789 = vmatpush2.bf16.xpose.msra.mxu0 0
      %790 = vmatprep.subr.bf16.mxu0 0
      %791 = vmatpush2.bf16.xpose.msra.mxu0 0
      %792 = vmatprep.subr.bf16.mxu0 0
      %793 = vmatpush2.bf16.xpose.msra.mxu0 0
      %794 = vmatprep.subr.bf16.mxu0 0
      %795 = vmatpush2.bf16.xpose.msra.mxu0 0
      %796 = vmatprep.subr.bf16.mxu0 0
      %797 = vmatpush2.bf16.xpose.msra.mxu0 0
      %798 = vmatprep.subr.bf16.mxu0 0
      %799 = vmatpush2.bf16.xpose.msra.mxu0 0
      %800 = vmatprep.mubr.bf16.mxu0 0
      %801 = vmatmul.mubr.bf16.gmra.mxu0 %v763
      %v802 = vpop.f32.mrf.mxu0
      %v803 = vadd.f32 0.0, %v802
      %v804 = vpop.f32.mrf.mxu0
      %v805 = vpop.f32.mrf.mxu0
      %v806 = vpop.f32.mrf.mxu0
      %807 = vdwg.mxu0
      %v808 = vmul.f32 %v803, 0.35355338
      %v809 = vsel %vm413, -1e+30, %v808
      %v810 = vsel %vm414, %v809, -inf
      %811 = vmax.xlane.f32.xlu0 %v810
      %v812 = vpop.xlane.xlu0 %811
      %v813 = vsub.f32 %v809, %v812
      %v814 = vmul.f32 %v813, 1.442695
      %v815 = vpow.pop %v814
      %v816 = vsel %vm413, 0.0, %v815
      %v817 = vsel %vm414, %v816, 0.0
      %818 = vadd.xlane.f32.xlu0 %v817
      %v819 = vpop.xlane.xlu0 %818
      %vm820 = vcmp.gt.f32.partialorder %v819, 0.0
      %v821 = vsel %vm820, %v819, 1.0
      %v822 = vrcp.pop %v821
      %v823 = vmul.f32 %v816, %v822
      %v824 = vpack.c.bf16 %v823, %v823
      %825 = vrot.lane.b32.xlu0 %v399, 104
      %v826 = vpop.permute.xlu0 %825
      %v828 = vsel %vm414, %v824, 0
      %v831 = vsel %vm481, %v826, 0
      %833 = vmatprep.subr.bf16.mxu0 0
      %834 = vmatpush1.bf16.msra.mxu0 0
      %835 = vmatprep.subr.bf16.mxu0 0
      %836 = vmatpush1.bf16.msra.mxu0 0
      %837 = vmatprep.subr.bf16.mxu0 0
      %838 = vmatpush1.bf16.msra.mxu0 0
      %839 = vmatprep.subr.bf16.mxu0 0
      %840 = vmatpush1.bf16.msra.mxu0 0
      %841 = vmatprep.subr.bf16.mxu0 0
      %842 = vmatpush1.bf16.msra.mxu0 0
      %843 = vmatprep.subr.bf16.mxu0 0
      %844 = vmatpush1.bf16.msra.mxu0 0
      %845 = vmatprep.subr.bf16.mxu0 0
      %846 = vmatpush1.bf16.msra.mxu0 0
      %847 = vmatprep.subr.bf16.mxu0 0
      %848 = vmatpush1.bf16.msra.mxu0 %v831
      %849 = vmatprep.subr.bf16.mxu0 0
      %850 = vmatpush2.bf16.msra.mxu0 0
      %851 = vmatprep.subr.bf16.mxu0 0
      %852 = vmatpush2.bf16.msra.mxu0 0
      %853 = vmatprep.subr.bf16.mxu0 0
      %854 = vmatpush2.bf16.msra.mxu0 0
      %855 = vmatprep.subr.bf16.mxu0 0
      %856 = vmatpush2.bf16.msra.mxu0 0
      %857 = vmatprep.subr.bf16.mxu0 0
      %858 = vmatpush2.bf16.msra.mxu0 0
      %859 = vmatprep.subr.bf16.mxu0 0
      %860 = vmatpush2.bf16.msra.mxu0 0
      %861 = vmatprep.subr.bf16.mxu0 0
      %862 = vmatpush2.bf16.msra.mxu0 0
      %863 = vmatprep.subr.bf16.mxu0 0
      %864 = vmatpush2.bf16.msra.mxu0 0
      %865 = vmatprep.mubr.bf16.mxu0 0
      %866 = vmatmul.mubr.bf16.gmra.mxu0 %v828
      %v867 = vpop.f32.mrf.mxu0
      %v868 = vadd.f32 0.0, %v867
      %v869 = vpop.f32.mrf.mxu0
      %v870 = vpop.f32.mrf.mxu0
      %v871 = vpop.f32.mrf.mxu0
      %872 = vdwg.mxu0
      %874 = vrot.lane.b32.xlu0 %v638, 8
      %v875 = vpop.permute.xlu0 %874
      %878 = vrot.lane.b32.xlu0 %v753, 16
      %v879 = vpop.permute.xlu0 %878
      %882 = vrot.lane.b32.xlu0 %v868, 24
      %v883 = vpop.permute.xlu0 %882
      %v885 = vsel %vm414, %v520, %v875
      %vm886 = vcmask 130048
      %v887 = vsel %vm886, %v885, %v879
      %vm888 = vcmask 195584
      %v889 = vsel %vm888, %v887, %v883
      %v890 = vpack.c.bf16 %v889, %v889
      %v891 = vld [vmem:[%s5] sm:$0xf]
      %v892 = vld [vmem:[%s5 + $0x4] sm:$0xf]
      %v893 = vld [vmem:[%s5 + $0x8] sm:$0xf]
      %v894 = vld [vmem:[%s5 + $0xc] sm:$0xf]
      %v895 = vld [vmem:[%s6] sm:$0x1]
      %v897 = vlaneseq
      %v898 = vshrl.u32 %v897, 7
      %v899 = vsub.s32 0, %v898
      %v900 = vrot.slane %v895, %v899
      %v906 = vunpack.c.l.b16 %v891
      %v907 = vunpack.c.l.b16 %v892
      %v908 = vunpack.c.l.b16 %v893
      %v909 = vunpack.c.l.b16 %v894
      %v910 = vpack.c.b16 %v907, %v906
      %v911 = vpack.c.b16 %v909, %v908
      %vm914 = vcmask 261120
      %v916 = vsel %vm914, %v890, 0
      %918 = vmatprep.subr.bf16.mxu0 0
      %919 = vmatpush1.bf16.msra.mxu0 0
      %920 = vmatprep.subr.bf16.mxu0 0
      %921 = vmatpush1.bf16.msra.mxu0 0
      %922 = vmatprep.subr.bf16.mxu0 0
      %923 = vmatpush1.bf16.msra.mxu0 0
      %924 = vmatprep.subr.bf16.mxu0 0
      %925 = vmatpush1.bf16.msra.mxu0 0
      %926 = vmatprep.subr.bf16.mxu0 0
      %927 = vmatpush1.bf16.msra.mxu0 0
      %928 = vmatprep.subr.bf16.mxu0 0
      %929 = vmatpush1.bf16.msra.mxu0 0
      %930 = vmatprep.subr.bf16.mxu0 0
      %931 = vmatpush1.bf16.msra.mxu0 %v911
      %932 = vmatprep.subr.bf16.mxu0 0
      %933 = vmatpush1.bf16.msra.mxu0 %v910
      %934 = vmatprep.subr.bf16.mxu0 0
      %935 = vmatpush2.bf16.msra.mxu0 0
      %936 = vmatprep.subr.bf16.mxu0 0
      %937 = vmatpush2.bf16.msra.mxu0 0
      %938 = vmatprep.subr.bf16.mxu0 0
      %939 = vmatpush2.bf16.msra.mxu0 0
      %940 = vmatprep.subr.bf16.mxu0 0
      %941 = vmatpush2.bf16.msra.mxu0 0
      %942 = vmatprep.subr.bf16.mxu0 0
      %943 = vmatpush2.bf16.msra.mxu0 0
      %944 = vmatprep.subr.bf16.mxu0 0
      %945 = vmatpush2.bf16.msra.mxu0 0
      %946 = vmatprep.subr.bf16.mxu0 0
      %947 = vmatpush2.bf16.msra.mxu0 0
      %948 = vmatprep.subr.bf16.mxu0 0
      %949 = vmatpush2.bf16.msra.mxu0 0
      %950 = vmatprep.mubr.bf16.mxu0 0
      %951 = vmatmul.mubr.bf16.gmra.mxu0 %v916
      %v952 = vpop.f32.mrf.mxu0
      %v953 = vadd.f32 %v900, %v952
      %v954 = vpop.f32.mrf.mxu0
      %v955 = vpop.f32.mrf.mxu0
      %v956 = vpop.f32.mrf.mxu0
      %957 = vdwg.mxu0
      %v958 = vld [vmem:[%s7] sm:$0x1]
      %v959 = vld [vmem:[%s8] sm:$0x1]
      %v960 = vsel %vm914, %v953, 0.0
      %961 = vadd.xlane.f32.xlu0 %v960
      %v962 = vpop.xlane.xlu0 %961
      %v963 = vrcp.pop 32.0
      %v964 = vmul.f32 %v962, %v963
      %v965 = vsub.f32 %v953, %v964
      %v966 = vmul.f32 %v965, %v965
      %v967 = vsel %vm914, %v966, 0.0
      %968 = vadd.xlane.f32.xlu0 %v967
      %v969 = vpop.xlane.xlu0 %968
      %v970 = vmul.f32 %v969, %v963
      %v971 = vadd.f32 %v970, 1e-05
      %v972 = vrsqrt.pop %v971
      %v973 = vmul.f32 %v965, %v972
      %v975 = vlaneseq
      %v976 = vshrl.u32 %v975, 7
      %v977 = vsub.s32 0, %v976
      %v978 = vrot.slane %v958, %v977
      %v980 = vmul.f32 %v973, %v978
      %v982 = vlaneseq
      %v983 = vshrl.u32 %v982, 7
      %v984 = vsub.s32 0, %v983
      %v985 = vrot.slane %v959, %v984
      %v987 = vadd.f32 %v980, %v985
      %v988 = vld [vmem:[%s388] sm:$0xff]
      %v989 = vadd.f32 %v987, %v988
      %990 = vst.msk [vmem:[%s392] sm:$0xff] %vm914, %v989
      %p991 = scmp.lt.s32.totalorder %s20, 1
      %s992 = scalar_select %p991, %s20, 1
      %s993 = smul.addr %s992, 8
      %s994 = scalar_lea.vmem %s9, %s993
      // Predicated region
      $region57: #{decoder_forward.8} parent=55 // pred_check
        %p995 = pneg %p252
      $region58: #{decoder_forward.8} parent=55 // pred_check_branch
        %997 = sbr.rel (%p995) target = $region60
      $region59: #{decoder_forward.8} parent=55 // pred_region
        _
      $region60: #{decoder_forward.8} parent=55 // pred_fallthru
        _
    $region56: #{decoder_forward.8} parent=5 // pred_fallthru
      _
    %p998 = scmp.le.s32.totalorder 2, %s15
    // Predicated region
    $region61: #{decoder_forward.8} parent=5 // pred_check
      %p999 = pneg %p998
    $region62: #{decoder_forward.8} parent=5 // pred_check_branch
      %1001 = sbr.rel (%p999) target = $region64
    $region63: #{decoder_forward.8} parent=5 // pred_region
      %s1002 = ssub.s32 %s15, 2
      // Predicated region
      $region65: #{decoder_forward.8} parent=63 // pred_check
        %p1003 = pneg %p258
      $region66: #{decoder_forward.8} parent=63 // pred_check_branch
        %1005 = sbr.rel (%p1003) target = $region68
      $region67: #{decoder_forward.8} parent=63 // pred_region
        %p1006 = scmp.lt.s32.totalorder %s21, 1
        %s1007 = scalar_select %p1006, %s21, 1
        %s1008 = smul.addr %s1007, 8
        %s1009 = scalar_lea.vmem %s9, %s1008
      $region68: #{decoder_forward.8} parent=63 // pred_fallthru
        _
    $region64: #{decoder_forward.8} parent=5 // pred_fallthru
      _
  $region6: #{decoder_forward.8} parent=0 // loop_footer
    %s19 = sadd.s32 1, %s15
  $region7: #{decoder_forward.8} parent=0 // loop_footer_branch
    %14 = sbr.rel target = $region3
  $region8: #{decoder_forward.8} parent=0 // loop_exit
    _

</llo_original>
